<compile_context>
chip_gen: v5e
topology: v5e:2x2
jax: 0.10.0
libtpu: 0.0.40
codegen_flags: <defaults>
</compile_context>

<pallas_src>
import functools

import jax
import jax.numpy as jnp
from jax.experimental import pallas as pl
from jax.experimental.pallas import tpu as pltpu


def _cbam_kernel(x_ref, w1_ref, b1_ref, w2_ref, b2_ref, wm_ref, bsp_ref,
                 out_ref, *, Nb, C, H, W, K):
    """Fused CBAM forward for Nb samples; block layout (Nb*C, H*W)."""
    HW = H * W
    pad = (K - 1) // 2

    x = x_ref[...]                                          # (Nb*C, HW) f32

    # ---------------- ChannelGate: pooled stats ----------------
    # Sum over HW on the (otherwise idle) MXU; max stays on the XLU.
    ones_hw = jnp.ones((HW, 1), jnp.float32)
    row_sum = jnp.dot(x, ones_hw, preferred_element_type=jnp.float32)   # (NbC, 1)
    row_avg = row_sum * (1.0 / HW)
    row_max = jnp.max(x, axis=1, keepdims=True)                         # (NbC, 1)

    # Shared 2-layer MLP applied to all 2*Nb pooled vectors at once: (C, 2*Nb)
    cols = []
    for n in range(Nb):                                     # static, tile-aligned slices
        cols.append(row_avg[n * C:(n + 1) * C])             # (C, 1)
        cols.append(row_max[n * C:(n + 1) * C])             # (C, 1)
    v = jnp.concatenate(cols, axis=1)                       # (C, 2*Nb)
    h = jnp.dot(w1_ref[...], v, preferred_element_type=jnp.float32) + b1_ref[...]
    h = jnp.maximum(h, 0.0)                                 # (Ch, 2*Nb)
    o = jnp.dot(w2_ref[...], h, preferred_element_type=jnp.float32) + b2_ref[...]
    # o: (C, 2*Nb); columns (2n, 2n+1) are the avg / max branch of sample n.

    # -------- apply channel scale + compress channels (per sample) --------
    ones_c = jnp.full((1, C), 1.0 / C, jnp.float32)
    xcg, cmaxs, cmeans = [], [], []
    for n in range(Nb):
        cscale = jax.nn.sigmoid(o[:, 2 * n:2 * n + 1] + o[:, 2 * n + 1:2 * n + 2])
        xn = x[n * C:(n + 1) * C] * cscale                  # (C, HW), stays in VMEM
        xcg.append(xn)
        cmaxs.append(jnp.max(xn, axis=0, keepdims=True))    # (1, HW)  XLU
        cmeans.append(jnp.dot(ones_c, xn,
                              preferred_element_type=jnp.float32))  # (1, HW) MXU

    # Packed compressed map: rows [max_0..max_{Nb-1}, mean_0..mean_{Nb-1}]
    packed = jnp.concatenate(cmaxs + cmeans, axis=0)        # (2*Nb, HW)

    # ------------- 7x7 SAME conv (2 -> 1) in flattened layout -------------
    # output[p] = bias + sum_taps w[tap] * comp[p + dy*W + dx] (zero padded).
    # One lane-roll per tap on the packed map; boundary masks are already
    # multiplied into the per-tap weight planes wm_ref[t] (2*Nb, HW).
    acc0 = jnp.zeros((2 * Nb, HW), jnp.float32)
    acc1 = jnp.zeros((2 * Nb, HW), jnp.float32)
    accs = [acc0, acc1]
    t = 0
    for ky in range(K):
        dy = ky - pad
        for kx in range(K):
            dx = kx - pad
            shift = (-(dy * W + dx)) % HW                   # static, non-negative
            shifted = packed if shift == 0 else pltpu.roll(packed, shift=shift, axis=1)
            accs[t & 1] = accs[t & 1] + shifted * wm_ref[t]
            t += 1
    acc = accs[0] + accs[1]                                 # (2*Nb, HW)
    conv = acc[0:Nb] + acc[Nb:2 * Nb] + bsp_ref[0]          # (Nb, HW)
    sscale = jax.nn.sigmoid(conv)                           # (Nb, HW)

    # ---------------- fused, lane-dense output write ----------------
    for n in range(Nb):
        out_ref[n * C:(n + 1) * C, :] = xcg[n] * sscale[n:n + 1, :]


def _pick_nb(n_batch):
    # samples per grid step: 2*Nb packed rows <= 8 sublanes of a vreg
    for nb in (4, 2, 1):
        if n_batch % nb == 0:
            return nb
    return 1


def cbam_forward(x, params):
    N, C, H, W = x.shape
    HW = H * W
    K = 7
    pad = (K - 1) // 2

    w1, b1, w2, b2 = params["w1"], params["b1"], params["w2"], params["b2"]
    wsp, bsp = params["wsp"], params["bsp"]
    Ch = w1.shape[0]

    Nb = _pick_nb(N)
    NbC = Nb * C

    # ---- host-side: per-tap boundary masks pre-multiplied into conv weights ----
    pos = jnp.arange(HW, dtype=jnp.int32)
    colp = pos % W
    rowp = pos // W
    masks = []
    for ky in range(K):
        dy = ky - pad
        for kx in range(K):
            dx = kx - pad
            ok = ((colp + dx >= 0) & (colp + dx < W)
                  & (rowp + dy >= 0) & (rowp + dy < H))
            masks.append(ok.astype(jnp.float32))
    mask = jnp.stack(masks)                                 # (K*K, HW)
    wsp2 = wsp.reshape(2, K * K)                            # [w_max ; w_mean]
    wm_max = wsp2[0][:, None] * mask                        # (K*K, HW)
    wm_mean = wsp2[1][:, None] * mask                       # (K*K, HW)
    wm = jnp.concatenate(
        [jnp.broadcast_to(wm_max[:, None, :], (K * K, Nb, HW)),
         jnp.broadcast_to(wm_mean[:, None, :], (K * K, Nb, HW))],
        axis=1)                                             # (K*K, 2*Nb, HW)

    x2 = x.reshape(N * C, HW)

    out2 = pl.pallas_call(
        functools.partial(_cbam_kernel, Nb=Nb, C=C, H=H, W=W, K=K),
        out_shape=jax.ShapeDtypeStruct((N * C, HW), jnp.float32),
        grid_spec=pltpu.PrefetchScalarGridSpec(
            num_scalar_prefetch=0,
            grid=(N // Nb,),
            in_specs=[
                pl.BlockSpec((NbC, HW), lambda n: (n, 0)),               # x
                pl.BlockSpec((Ch, C), lambda n: (0, 0)),                 # W1
                pl.BlockSpec((Ch, 1), lambda n: (0, 0)),                 # b1
                pl.BlockSpec((C, Ch), lambda n: (0, 0)),                 # W2
                pl.BlockSpec((C, 1), lambda n: (0, 0)),                  # b2
                pl.BlockSpec((K * K, 2 * Nb, HW), lambda n: (0, 0, 0)),  # pre-masked conv wts
                pl.BlockSpec(memory_space=pltpu.MemorySpace.SMEM),       # conv bias
            ],
            out_specs=pl.BlockSpec((NbC, HW), lambda n: (n, 0)),
        ),
        compiler_params=pltpu.CompilerParams(
            dimension_semantics=("parallel",)),
    )(x2, w1, b1, w2, b2, wm, bsp)

    return out2.reshape(N, C, H, W)


# ---------------------------------------------------------------------------
# Pure-JAX reference (for correctness check)
# ---------------------------------------------------------------------------
def cbam_reference(x, params):
    w1, b1, w2, b2 = params["w1"], params["b1"], params["w2"], params["b2"]
    wsp, bsp = params["wsp"], params["bsp"]

    avg = jnp.mean(x, axis=(2, 3))                          # (N, C)
    mx = jnp.max(x, axis=(2, 3))                            # (N, C)

    def mlp(v):
        h = jnp.maximum(v @ w1.T + b1[:, 0], 0.0)
        return h @ w2.T + b2[:, 0]

    att = mlp(avg) + mlp(mx)
    cscale = jax.nn.sigmoid(att)[:, :, None, None]
    xcg = x * cscale

    comp = jnp.stack([jnp.max(xcg, axis=1), jnp.mean(xcg, axis=1)], axis=1)
    w4 = wsp.reshape(1, 2, 7, 7)
    conv = jax.lax.conv_general_dilated(
        comp, w4, window_strides=(1, 1), padding="SAME",
        dimension_numbers=("NCHW", "OIHW", "NCHW")) + bsp[0]
    sscale = jax.nn.sigmoid(conv)                           # (N, 1, H, W)
    return xcg * sscale


if __name__ == "__main__":
    N, C, H, W = 8, 32, 16, 16          # gate_channels=32, reduction_ratio=16
    r = 16
    Ch = C // r

    key = jax.random.PRNGKey(0)
    ks = jax.random.split(key, 7)
    params = {
        "w1": jax.random.normal(ks[0], (Ch, C), jnp.float32) * 0.2,
        "b1": jax.random.normal(ks[1], (Ch, 1), jnp.float32) * 0.1,
        "w2": jax.random.normal(ks[2], (C, Ch), jnp.float32) * 0.2,
        "b2": jax.random.normal(ks[3], (C, 1), jnp.float32) * 0.1,
        "wsp": jax.random.normal(ks[4], (2 * 7 * 7,), jnp.float32) * 0.1,
        "bsp": jax.random.normal(ks[5], (1,), jnp.float32) * 0.1,
    }
    x = jax.random.normal(ks[6], (N, C, H, W), jnp.float32)

    out = cbam_forward(x, params)
    out = jax.block_until_ready(out)

    ref = cbam_reference(x, params)
    assert out.shape == (N, C, H, W)
    assert jnp.max(jnp.abs(out - ref)) < 1e-3, "mismatch vs reference"

    print("KERNEL_OK")
</pallas_src>

<mosaic_0001>
module attributes {stable_mosaic.version = 11 : i64} {
  func.func @_cbam_kernel(%arg0: i32, %arg1: memref<128x256xf32, #tpu.memory_space<vmem>>, %arg2: memref<2x32xf32, #tpu.memory_space<vmem>>, %arg3: memref<2x1xf32, #tpu.memory_space<vmem>>, %arg4: memref<32x2xf32, #tpu.memory_space<vmem>>, %arg5: memref<32x1xf32, #tpu.memory_space<vmem>>, %arg6: memref<49x8x256xf32, #tpu.memory_space<vmem>>, %arg7: memref<1xf32, #tpu.memory_space<smem>>, %arg8: memref<128x256xf32, #tpu.memory_space<vmem>>) attributes {dimension_semantics = [#tpu.dimension_semantics<parallel>], iteration_bounds = array<i64: 2>, scalar_prefetch = 0 : i64, scratch_operands = 0 : i64, tpu.core_type = #tpu.core_type<tc>, window_params = [{transform_indices = @transform_0, window_bounds = array<i64: 128, 256>}, {pipeline_mode = #tpu.pipeline_mode<synchronous>, transform_indices = @transform_1, window_bounds = array<i64: 2, 32>}, {pipeline_mode = #tpu.pipeline_mode<synchronous>, transform_indices = @transform_2, window_bounds = array<i64: 2, 1>}, {pipeline_mode = #tpu.pipeline_mode<synchronous>, transform_indices = @transform_3, window_bounds = array<i64: 32, 2>}, {pipeline_mode = #tpu.pipeline_mode<synchronous>, transform_indices = @transform_4, window_bounds = array<i64: 32, 1>}, {pipeline_mode = #tpu.pipeline_mode<synchronous>, transform_indices = @transform_5, window_bounds = array<i64: 49, 8, 256>}, {transform_indices = @transform_6, window_bounds = array<i64: 1>}, {transform_indices = @transform_7, window_bounds = array<i64: 128, 256>}]} {
    %c0 = arith.constant 0 : index
    %c0_0 = arith.constant 0 : index
    %0 = vector.load %arg1[%c0, %c0_0] : memref<128x256xf32, #tpu.memory_space<vmem>>, vector<128x256xf32>
    %cst = arith.constant 1.000000e+00 : f32
    %1 = vector.broadcast %cst : f32 to vector<256x1xf32>
    %cst_1 = arith.constant dense<0.000000e+00> : vector<128x1xf32>
    %2 = tpu.matmul %0, %1, %cst_1 {dimension_numbers = #tpu.dot_dimension_numbers<[1], [0], [0], [1], [0, 0, 1, 1], [], []>} : vector<128x256xf32>, vector<256x1xf32>, vector<128x1xf32> -> vector<128x1xf32>
    %cst_2 = arith.constant 3.906250e-03 : f32
    %3 = vector.broadcast %cst_2 : f32 to vector<128x1xf32>
    %4 = arith.mulf %2, %3 : vector<128x1xf32>
    %cst_3 = arith.constant dense<0xFF800000> : vector<128xf32>
    %5 = vector.multi_reduction <maximumf>, %0, %cst_3 [1] : vector<128x256xf32> to vector<128xf32>
    %6 = vector.shape_cast %5 : vector<128xf32> to vector<128x1xf32>
    %7 = vector.extract_strided_slice %4 {offsets = [0, 0], sizes = [32, 1], strides = [1, 1]} : vector<128x1xf32> to vector<32x1xf32>
    %8 = vector.extract_strided_slice %6 {offsets = [0, 0], sizes = [32, 1], strides = [1, 1]} : vector<128x1xf32> to vector<32x1xf32>
    %9 = vector.extract_strided_slice %4 {offsets = [32, 0], sizes = [32, 1], strides = [1, 1]} : vector<128x1xf32> to vector<32x1xf32>
    %10 = vector.extract_strided_slice %6 {offsets = [32, 0], sizes = [32, 1], strides = [1, 1]} : vector<128x1xf32> to vector<32x1xf32>
    %11 = vector.extract_strided_slice %4 {offsets = [64, 0], sizes = [32, 1], strides = [1, 1]} : vector<128x1xf32> to vector<32x1xf32>
    %12 = vector.extract_strided_slice %6 {offsets = [64, 0], sizes = [32, 1], strides = [1, 1]} : vector<128x1xf32> to vector<32x1xf32>
    %13 = vector.extract_strided_slice %4 {offsets = [96, 0], sizes = [32, 1], strides = [1, 1]} : vector<128x1xf32> to vector<32x1xf32>
    %14 = vector.extract_strided_slice %6 {offsets = [96, 0], sizes = [32, 1], strides = [1, 1]} : vector<128x1xf32> to vector<32x1xf32>
    %15 = tpu.concatenate %7, %8, %9, %10, %11, %12, %13, %14 in 1 : vector<32x1xf32>, vector<32x1xf32>, vector<32x1xf32>, vector<32x1xf32>, vector<32x1xf32>, vector<32x1xf32>, vector<32x1xf32>, vector<32x1xf32> -> vector<32x8xf32>
    %c0_4 = arith.constant 0 : index
    %c0_5 = arith.constant 0 : index
    %16 = vector.load %arg2[%c0_4, %c0_5] : memref<2x32xf32, #tpu.memory_space<vmem>>, vector<2x32xf32>
    %cst_6 = arith.constant dense<0.000000e+00> : vector<2x8xf32>
    %17 = tpu.matmul %16, %15, %cst_6 {dimension_numbers = #tpu.dot_dimension_numbers<[1], [0], [0], [1], [0, 0, 1, 1], [], []>} : vector<2x32xf32>, vector<32x8xf32>, vector<2x8xf32> -> vector<2x8xf32>
    %c0_7 = arith.constant 0 : index
    %c0_8 = arith.constant 0 : index
    %18 = vector.load %arg3[%c0_7, %c0_8] : memref<2x1xf32, #tpu.memory_space<vmem>>, vector<2x1xf32>
    %19 = vector.broadcast %18 : vector<2x1xf32> to vector<2x8xf32>
    %20 = arith.addf %17, %19 : vector<2x8xf32>
    %cst_9 = arith.constant 0.000000e+00 : f32
    %21 = vector.broadcast %cst_9 : f32 to vector<2x8xf32>
    %22 = arith.maximumf %20, %21 : vector<2x8xf32>
    %c0_10 = arith.constant 0 : index
    %c0_11 = arith.constant 0 : index
    %23 = vector.load %arg4[%c0_10, %c0_11] : memref<32x2xf32, #tpu.memory_space<vmem>>, vector<32x2xf32>
    %cst_12 = arith.constant dense<0.000000e+00> : vector<32x8xf32>
    %24 = tpu.matmul %23, %22, %cst_12 {dimension_numbers = #tpu.dot_dimension_numbers<[1], [0], [0], [1], [0, 0, 1, 1], [], []>} : vector<32x2xf32>, vector<2x8xf32>, vector<32x8xf32> -> vector<32x8xf32>
    %c0_13 = arith.constant 0 : index
    %c0_14 = arith.constant 0 : index
    %25 = vector.load %arg5[%c0_13, %c0_14] : memref<32x1xf32, #tpu.memory_space<vmem>>, vector<32x1xf32>
    %26 = vector.broadcast %25 : vector<32x1xf32> to vector<32x8xf32>
    %27 = arith.addf %24, %26 : vector<32x8xf32>
    %cst_15 = arith.constant 3.125000e-02 : f32
    %28 = vector.broadcast %cst_15 : f32 to vector<1x32xf32>
    %29 = vector.extract_strided_slice %27 {offsets = [0, 0], sizes = [32, 1], strides = [1, 1]} : vector<32x8xf32> to vector<32x1xf32>
    %30 = vector.extract_strided_slice %27 {offsets = [0, 1], sizes = [32, 1], strides = [1, 1]} : vector<32x8xf32> to vector<32x1xf32>
    %31 = arith.addf %29, %30 : vector<32x1xf32>
    %32 = arith.negf %31 : vector<32x1xf32>
    %33 = math.exp %32 : vector<32x1xf32>
    %cst_16 = arith.constant 1.000000e+00 : f32
    %34 = vector.broadcast %cst_16 : f32 to vector<32x1xf32>
    %35 = arith.addf %34, %33 : vector<32x1xf32>
    %36 = arith.divf %34, %35 : vector<32x1xf32>
    %37 = vector.extract_strided_slice %0 {offsets = [0, 0], sizes = [32, 256], strides = [1, 1]} : vector<128x256xf32> to vector<32x256xf32>
    %38 = vector.broadcast %36 : vector<32x1xf32> to vector<32x256xf32>
    %39 = arith.mulf %37, %38 : vector<32x256xf32>
    %cst_17 = arith.constant dense<0xFF800000> : vector<256xf32>
    %40 = vector.multi_reduction <maximumf>, %39, %cst_17 [0] : vector<32x256xf32> to vector<256xf32>
    %41 = vector.shape_cast %40 : vector<256xf32> to vector<1x256xf32>
    %cst_18 = arith.constant dense<0.000000e+00> : vector<1x256xf32>
    %42 = tpu.matmul %28, %39, %cst_18 {dimension_numbers = #tpu.dot_dimension_numbers<[1], [0], [0], [1], [0, 0, 1, 1], [], []>} : vector<1x32xf32>, vector<32x256xf32>, vector<1x256xf32> -> vector<1x256xf32>
    %43 = vector.extract_strided_slice %27 {offsets = [0, 2], sizes = [32, 1], strides = [1, 1]} : vector<32x8xf32> to vector<32x1xf32>
    %44 = vector.extract_strided_slice %27 {offsets = [0, 3], sizes = [32, 1], strides = [1, 1]} : vector<32x8xf32> to vector<32x1xf32>
    %45 = arith.addf %43, %44 : vector<32x1xf32>
    %46 = arith.negf %45 : vector<32x1xf32>
    %47 = math.exp %46 : vector<32x1xf32>
    %cst_19 = arith.constant 1.000000e+00 : f32
    %48 = vector.broadcast %cst_19 : f32 to vector<32x1xf32>
    %49 = arith.addf %48, %47 : vector<32x1xf32>
    %50 = arith.divf %48, %49 : vector<32x1xf32>
    %51 = vector.extract_strided_slice %0 {offsets = [32, 0], sizes = [32, 256], strides = [1, 1]} : vector<128x256xf32> to vector<32x256xf32>
    %52 = vector.broadcast %50 : vector<32x1xf32> to vector<32x256xf32>
    %53 = arith.mulf %51, %52 : vector<32x256xf32>
    %cst_20 = arith.constant dense<0xFF800000> : vector<256xf32>
    %54 = vector.multi_reduction <maximumf>, %53, %cst_20 [0] : vector<32x256xf32> to vector<256xf32>
    %55 = vector.shape_cast %54 : vector<256xf32> to vector<1x256xf32>
    %cst_21 = arith.constant dense<0.000000e+00> : vector<1x256xf32>
    %56 = tpu.matmul %28, %53, %cst_21 {dimension_numbers = #tpu.dot_dimension_numbers<[1], [0], [0], [1], [0, 0, 1, 1], [], []>} : vector<1x32xf32>, vector<32x256xf32>, vector<1x256xf32> -> vector<1x256xf32>
    %57 = vector.extract_strided_slice %27 {offsets = [0, 4], sizes = [32, 1], strides = [1, 1]} : vector<32x8xf32> to vector<32x1xf32>
    %58 = vector.extract_strided_slice %27 {offsets = [0, 5], sizes = [32, 1], strides = [1, 1]} : vector<32x8xf32> to vector<32x1xf32>
    %59 = arith.addf %57, %58 : vector<32x1xf32>
    %60 = arith.negf %59 : vector<32x1xf32>
    %61 = math.exp %60 : vector<32x1xf32>
    %cst_22 = arith.constant 1.000000e+00 : f32
    %62 = vector.broadcast %cst_22 : f32 to vector<32x1xf32>
    %63 = arith.addf %62, %61 : vector<32x1xf32>
    %64 = arith.divf %62, %63 : vector<32x1xf32>
    %65 = vector.extract_strided_slice %0 {offsets = [64, 0], sizes = [32, 256], strides = [1, 1]} : vector<128x256xf32> to vector<32x256xf32>
    %66 = vector.broadcast %64 : vector<32x1xf32> to vector<32x256xf32>
    %67 = arith.mulf %65, %66 : vector<32x256xf32>
    %cst_23 = arith.constant dense<0xFF800000> : vector<256xf32>
    %68 = vector.multi_reduction <maximumf>, %67, %cst_23 [0] : vector<32x256xf32> to vector<256xf32>
    %69 = vector.shape_cast %68 : vector<256xf32> to vector<1x256xf32>
    %cst_24 = arith.constant dense<0.000000e+00> : vector<1x256xf32>
    %70 = tpu.matmul %28, %67, %cst_24 {dimension_numbers = #tpu.dot_dimension_numbers<[1], [0], [0], [1], [0, 0, 1, 1], [], []>} : vector<1x32xf32>, vector<32x256xf32>, vector<1x256xf32> -> vector<1x256xf32>
    %71 = vector.extract_strided_slice %27 {offsets = [0, 6], sizes = [32, 1], strides = [1, 1]} : vector<32x8xf32> to vector<32x1xf32>
    %72 = vector.extract_strided_slice %27 {offsets = [0, 7], sizes = [32, 1], strides = [1, 1]} : vector<32x8xf32> to vector<32x1xf32>
    %73 = arith.addf %71, %72 : vector<32x1xf32>
    %74 = arith.negf %73 : vector<32x1xf32>
    %75 = math.exp %74 : vector<32x1xf32>
    %cst_25 = arith.constant 1.000000e+00 : f32
    %76 = vector.broadcast %cst_25 : f32 to vector<32x1xf32>
    %77 = arith.addf %76, %75 : vector<32x1xf32>
    %78 = arith.divf %76, %77 : vector<32x1xf32>
    %79 = vector.extract_strided_slice %0 {offsets = [96, 0], sizes = [32, 256], strides = [1, 1]} : vector<128x256xf32> to vector<32x256xf32>
    %80 = vector.broadcast %78 : vector<32x1xf32> to vector<32x256xf32>
    %81 = arith.mulf %79, %80 : vector<32x256xf32>
    %cst_26 = arith.constant dense<0xFF800000> : vector<256xf32>
    %82 = vector.multi_reduction <maximumf>, %81, %cst_26 [0] : vector<32x256xf32> to vector<256xf32>
    %83 = vector.shape_cast %82 : vector<256xf32> to vector<1x256xf32>
    %cst_27 = arith.constant dense<0.000000e+00> : vector<1x256xf32>
    %84 = tpu.matmul %28, %81, %cst_27 {dimension_numbers = #tpu.dot_dimension_numbers<[1], [0], [0], [1], [0, 0, 1, 1], [], []>} : vector<1x32xf32>, vector<32x256xf32>, vector<1x256xf32> -> vector<1x256xf32>
    %85 = tpu.concatenate %41, %55, %69, %83, %42, %56, %70, %84 in 0 : vector<1x256xf32>, vector<1x256xf32>, vector<1x256xf32>, vector<1x256xf32>, vector<1x256xf32>, vector<1x256xf32>, vector<1x256xf32>, vector<1x256xf32> -> vector<8x256xf32>
    %cst_28 = arith.constant 0.000000e+00 : f32
    %86 = vector.broadcast %cst_28 : f32 to vector<8x256xf32>
    %cst_29 = arith.constant 0.000000e+00 : f32
    %87 = vector.broadcast %cst_29 : f32 to vector<8x256xf32>
    %c51_i32 = arith.constant 51 : i32
    %88 = tpu.dynamic_rotate %85 by %c51_i32 dim 1 : vector<8x256xf32>, i32 -> vector<8x256xf32>
    %c0_30 = arith.constant 0 : index
    %c0_31 = arith.constant 0 : index
    %c0_32 = arith.constant 0 : index
    %89 = vector.load %arg6[%c0_30, %c0_31, %c0_32] : memref<49x8x256xf32, #tpu.memory_space<vmem>>, vector<1x8x256xf32>
    %90 = vector.shape_cast %89 : vector<1x8x256xf32> to vector<8x256xf32>
    %91 = arith.mulf %88, %90 : vector<8x256xf32>
    %92 = arith.addf %86, %91 : vector<8x256xf32>
    %c50_i32 = arith.constant 50 : i32
    %93 = tpu.dynamic_rotate %85 by %c50_i32 dim 1 : vector<8x256xf32>, i32 -> vector<8x256xf32>
    %c1 = arith.constant 1 : index
    %c0_33 = arith.constant 0 : index
    %c0_34 = arith.constant 0 : index
    %94 = vector.load %arg6[%c1, %c0_33, %c0_34] : memref<49x8x256xf32, #tpu.memory_space<vmem>>, vector<1x8x256xf32>
    %95 = vector.shape_cast %94 : vector<1x8x256xf32> to vector<8x256xf32>
    %96 = arith.mulf %93, %95 : vector<8x256xf32>
    %97 = arith.addf %87, %96 : vector<8x256xf32>
    %c49_i32 = arith.constant 49 : i32
    %98 = tpu.dynamic_rotate %85 by %c49_i32 dim 1 : vector<8x256xf32>, i32 -> vector<8x256xf32>
    %c2 = arith.constant 2 : index
    %c0_35 = arith.constant 0 : index
    %c0_36 = arith.constant 0 : index
    %99 = vector.load %arg6[%c2, %c0_35, %c0_36] : memref<49x8x256xf32, #tpu.memory_space<vmem>>, vector<1x8x256xf32>
    %100 = vector.shape_cast %99 : vector<1x8x256xf32> to vector<8x256xf32>
    %101 = arith.mulf %98, %100 : vector<8x256xf32>
    %102 = arith.addf %92, %101 : vector<8x256xf32>
    %c48_i32 = arith.constant 48 : i32
    %103 = tpu.dynamic_rotate %85 by %c48_i32 dim 1 : vector<8x256xf32>, i32 -> vector<8x256xf32>
    %c3 = arith.constant 3 : index
    %c0_37 = arith.constant 0 : index
    %c0_38 = arith.constant 0 : index
    %104 = vector.load %arg6[%c3, %c0_37, %c0_38] : memref<49x8x256xf32, #tpu.memory_space<vmem>>, vector<1x8x256xf32>
    %105 = vector.shape_cast %104 : vector<1x8x256xf32> to vector<8x256xf32>
    %106 = arith.mulf %103, %105 : vector<8x256xf32>
    %107 = arith.addf %97, %106 : vector<8x256xf32>
    %c47_i32 = arith.constant 47 : i32
    %108 = tpu.dynamic_rotate %85 by %c47_i32 dim 1 : vector<8x256xf32>, i32 -> vector<8x256xf32>
    %c4 = arith.constant 4 : index
    %c0_39 = arith.constant 0 : index
    %c0_40 = arith.constant 0 : index
    %109 = vector.load %arg6[%c4, %c0_39, %c0_40] : memref<49x8x256xf32, #tpu.memory_space<vmem>>, vector<1x8x256xf32>
    %110 = vector.shape_cast %109 : vector<1x8x256xf32> to vector<8x256xf32>
    %111 = arith.mulf %108, %110 : vector<8x256xf32>
    %112 = arith.addf %102, %111 : vector<8x256xf32>
    %c46_i32 = arith.constant 46 : i32
    %113 = tpu.dynamic_rotate %85 by %c46_i32 dim 1 : vector<8x256xf32>, i32 -> vector<8x256xf32>
    %c5 = arith.constant 5 : index
    %c0_41 = arith.constant 0 : index
    %c0_42 = arith.constant 0 : index
    %114 = vector.load %arg6[%c5, %c0_41, %c0_42] : memref<49x8x256xf32, #tpu.memory_space<vmem>>, vector<1x8x256xf32>
    %115 = vector.shape_cast %114 : vector<1x8x256xf32> to vector<8x256xf32>
    %116 = arith.mulf %113, %115 : vector<8x256xf32>
    %117 = arith.addf %107, %116 : vector<8x256xf32>
    %c45_i32 = arith.constant 45 : i32
    %118 = tpu.dynamic_rotate %85 by %c45_i32 dim 1 : vector<8x256xf32>, i32 -> vector<8x256xf32>
    %c6 = arith.constant 6 : index
    %c0_43 = arith.constant 0 : index
    %c0_44 = arith.constant 0 : index
    %119 = vector.load %arg6[%c6, %c0_43, %c0_44] : memref<49x8x256xf32, #tpu.memory_space<vmem>>, vector<1x8x256xf32>
    %120 = vector.shape_cast %119 : vector<1x8x256xf32> to vector<8x256xf32>
    %121 = arith.mulf %118, %120 : vector<8x256xf32>
    %122 = arith.addf %112, %121 : vector<8x256xf32>
    %c35_i32 = arith.constant 35 : i32
    %123 = tpu.dynamic_rotate %85 by %c35_i32 dim 1 : vector<8x256xf32>, i32 -> vector<8x256xf32>
    %c7 = arith.constant 7 : index
    %c0_45 = arith.constant 0 : index
    %c0_46 = arith.constant 0 : index
    %124 = vector.load %arg6[%c7, %c0_45, %c0_46] : memref<49x8x256xf32, #tpu.memory_space<vmem>>, vector<1x8x256xf32>
    %125 = vector.shape_cast %124 : vector<1x8x256xf32> to vector<8x256xf32>
    %126 = arith.mulf %123, %125 : vector<8x256xf32>
    %127 = arith.addf %117, %126 : vector<8x256xf32>
    %c34_i32 = arith.constant 34 : i32
    %128 = tpu.dynamic_rotate %85 by %c34_i32 dim 1 : vector<8x256xf32>, i32 -> vector<8x256xf32>
    %c8 = arith.constant 8 : index
    %c0_47 = arith.constant 0 : index
    %c0_48 = arith.constant 0 : index
    %129 = vector.load %arg6[%c8, %c0_47, %c0_48] : memref<49x8x256xf32, #tpu.memory_space<vmem>>, vector<1x8x256xf32>
    %130 = vector.shape_cast %129 : vector<1x8x256xf32> to vector<8x256xf32>
    %131 = arith.mulf %128, %130 : vector<8x256xf32>
    %132 = arith.addf %122, %131 : vector<8x256xf32>
    %c33_i32 = arith.constant 33 : i32
    %133 = tpu.dynamic_rotate %85 by %c33_i32 dim 1 : vector<8x256xf32>, i32 -> vector<8x256xf32>
    %c9 = arith.constant 9 : index
    %c0_49 = arith.constant 0 : index
    %c0_50 = arith.constant 0 : index
    %134 = vector.load %arg6[%c9, %c0_49, %c0_50] : memref<49x8x256xf32, #tpu.memory_space<vmem>>, vector<1x8x256xf32>
    %135 = vector.shape_cast %134 : vector<1x8x256xf32> to vector<8x256xf32>
    %136 = arith.mulf %133, %135 : vector<8x256xf32>
    %137 = arith.addf %127, %136 : vector<8x256xf32>
    %c32_i32 = arith.constant 32 : i32
    %138 = tpu.dynamic_rotate %85 by %c32_i32 dim 1 : vector<8x256xf32>, i32 -> vector<8x256xf32>
    %c10 = arith.constant 10 : index
    %c0_51 = arith.constant 0 : index
    %c0_52 = arith.constant 0 : index
    %139 = vector.load %arg6[%c10, %c0_51, %c0_52] : memref<49x8x256xf32, #tpu.memory_space<vmem>>, vector<1x8x256xf32>
    %140 = vector.shape_cast %139 : vector<1x8x256xf32> to vector<8x256xf32>
    %141 = arith.mulf %138, %140 : vector<8x256xf32>
    %142 = arith.addf %132, %141 : vector<8x256xf32>
    %c31_i32 = arith.constant 31 : i32
    %143 = tpu.dynamic_rotate %85 by %c31_i32 dim 1 : vector<8x256xf32>, i32 -> vector<8x256xf32>
    %c11 = arith.constant 11 : index
    %c0_53 = arith.constant 0 : index
    %c0_54 = arith.constant 0 : index
    %144 = vector.load %arg6[%c11, %c0_53, %c0_54] : memref<49x8x256xf32, #tpu.memory_space<vmem>>, vector<1x8x256xf32>
    %145 = vector.shape_cast %144 : vector<1x8x256xf32> to vector<8x256xf32>
    %146 = arith.mulf %143, %145 : vector<8x256xf32>
    %147 = arith.addf %137, %146 : vector<8x256xf32>
    %c30_i32 = arith.constant 30 : i32
    %148 = tpu.dynamic_rotate %85 by %c30_i32 dim 1 : vector<8x256xf32>, i32 -> vector<8x256xf32>
    %c12 = arith.constant 12 : index
    %c0_55 = arith.constant 0 : index
    %c0_56 = arith.constant 0 : index
    %149 = vector.load %arg6[%c12, %c0_55, %c0_56] : memref<49x8x256xf32, #tpu.memory_space<vmem>>, vector<1x8x256xf32>
    %150 = vector.shape_cast %149 : vector<1x8x256xf32> to vector<8x256xf32>
    %151 = arith.mulf %148, %150 : vector<8x256xf32>
    %152 = arith.addf %142, %151 : vector<8x256xf32>
    %c29_i32 = arith.constant 29 : i32
    %153 = tpu.dynamic_rotate %85 by %c29_i32 dim 1 : vector<8x256xf32>, i32 -> vector<8x256xf32>
    %c13 = arith.constant 13 : index
    %c0_57 = arith.constant 0 : index
    %c0_58 = arith.constant 0 : index
    %154 = vector.load %arg6[%c13, %c0_57, %c0_58] : memref<49x8x256xf32, #tpu.memory_space<vmem>>, vector<1x8x256xf32>
    %155 = vector.shape_cast %154 : vector<1x8x256xf32> to vector<8x256xf32>
    %156 = arith.mulf %153, %155 : vector<8x256xf32>
    %157 = arith.addf %147, %156 : vector<8x256xf32>
    %c19_i32 = arith.constant 19 : i32
    %158 = tpu.dynamic_rotate %85 by %c19_i32 dim 1 : vector<8x256xf32>, i32 -> vector<8x256xf32>
    %c14 = arith.constant 14 : index
    %c0_59 = arith.constant 0 : index
    %c0_60 = arith.constant 0 : index
    %159 = vector.load %arg6[%c14, %c0_59, %c0_60] : memref<49x8x256xf32, #tpu.memory_space<vmem>>, vector<1x8x256xf32>
    %160 = vector.shape_cast %159 : vector<1x8x256xf32> to vector<8x256xf32>
    %161 = arith.mulf %158, %160 : vector<8x256xf32>
    %162 = arith.addf %152, %161 : vector<8x256xf32>
    %c18_i32 = arith.constant 18 : i32
    %163 = tpu.dynamic_rotate %85 by %c18_i32 dim 1 : vector<8x256xf32>, i32 -> vector<8x256xf32>
    %c15 = arith.constant 15 : index
    %c0_61 = arith.constant 0 : index
    %c0_62 = arith.constant 0 : index
    %164 = vector.load %arg6[%c15, %c0_61, %c0_62] : memref<49x8x256xf32, #tpu.memory_space<vmem>>, vector<1x8x256xf32>
    %165 = vector.shape_cast %164 : vector<1x8x256xf32> to vector<8x256xf32>
    %166 = arith.mulf %163, %165 : vector<8x256xf32>
    %167 = arith.addf %157, %166 : vector<8x256xf32>
    %c17_i32 = arith.constant 17 : i32
    %168 = tpu.dynamic_rotate %85 by %c17_i32 dim 1 : vector<8x256xf32>, i32 -> vector<8x256xf32>
    %c16 = arith.constant 16 : index
    %c0_63 = arith.constant 0 : index
    %c0_64 = arith.constant 0 : index
    %169 = vector.load %arg6[%c16, %c0_63, %c0_64] : memref<49x8x256xf32, #tpu.memory_space<vmem>>, vector<1x8x256xf32>
    %170 = vector.shape_cast %169 : vector<1x8x256xf32> to vector<8x256xf32>
    %171 = arith.mulf %168, %170 : vector<8x256xf32>
    %172 = arith.addf %162, %171 : vector<8x256xf32>
    %c16_i32 = arith.constant 16 : i32
    %173 = tpu.dynamic_rotate %85 by %c16_i32 dim 1 : vector<8x256xf32>, i32 -> vector<8x256xf32>
    %c17 = arith.constant 17 : index
    %c0_65 = arith.constant 0 : index
    %c0_66 = arith.constant 0 : index
    %174 = vector.load %arg6[%c17, %c0_65, %c0_66] : memref<49x8x256xf32, #tpu.memory_space<vmem>>, vector<1x8x256xf32>
    %175 = vector.shape_cast %174 : vector<1x8x256xf32> to vector<8x256xf32>
    %176 = arith.mulf %173, %175 : vector<8x256xf32>
    %177 = arith.addf %167, %176 : vector<8x256xf32>
    %c15_i32 = arith.constant 15 : i32
    %178 = tpu.dynamic_rotate %85 by %c15_i32 dim 1 : vector<8x256xf32>, i32 -> vector<8x256xf32>
    %c18 = arith.constant 18 : index
    %c0_67 = arith.constant 0 : index
    %c0_68 = arith.constant 0 : index
    %179 = vector.load %arg6[%c18, %c0_67, %c0_68] : memref<49x8x256xf32, #tpu.memory_space<vmem>>, vector<1x8x256xf32>
    %180 = vector.shape_cast %179 : vector<1x8x256xf32> to vector<8x256xf32>
    %181 = arith.mulf %178, %180 : vector<8x256xf32>
    %182 = arith.addf %172, %181 : vector<8x256xf32>
    %c14_i32 = arith.constant 14 : i32
    %183 = tpu.dynamic_rotate %85 by %c14_i32 dim 1 : vector<8x256xf32>, i32 -> vector<8x256xf32>
    %c19 = arith.constant 19 : index
    %c0_69 = arith.constant 0 : index
    %c0_70 = arith.constant 0 : index
    %184 = vector.load %arg6[%c19, %c0_69, %c0_70] : memref<49x8x256xf32, #tpu.memory_space<vmem>>, vector<1x8x256xf32>
    %185 = vector.shape_cast %184 : vector<1x8x256xf32> to vector<8x256xf32>
    %186 = arith.mulf %183, %185 : vector<8x256xf32>
    %187 = arith.addf %177, %186 : vector<8x256xf32>
    %c13_i32 = arith.constant 13 : i32
    %188 = tpu.dynamic_rotate %85 by %c13_i32 dim 1 : vector<8x256xf32>, i32 -> vector<8x256xf32>
    %c20 = arith.constant 20 : index
    %c0_71 = arith.constant 0 : index
    %c0_72 = arith.constant 0 : index
    %189 = vector.load %arg6[%c20, %c0_71, %c0_72] : memref<49x8x256xf32, #tpu.memory_space<vmem>>, vector<1x8x256xf32>
    %190 = vector.shape_cast %189 : vector<1x8x256xf32> to vector<8x256xf32>
    %191 = arith.mulf %188, %190 : vector<8x256xf32>
    %192 = arith.addf %182, %191 : vector<8x256xf32>
    %c3_i32 = arith.constant 3 : i32
    %193 = tpu.dynamic_rotate %85 by %c3_i32 dim 1 : vector<8x256xf32>, i32 -> vector<8x256xf32>
    %c21 = arith.constant 21 : index
    %c0_73 = arith.constant 0 : index
    %c0_74 = arith.constant 0 : index
    %194 = vector.load %arg6[%c21, %c0_73, %c0_74] : memref<49x8x256xf32, #tpu.memory_space<vmem>>, vector<1x8x256xf32>
    %195 = vector.shape_cast %194 : vector<1x8x256xf32> to vector<8x256xf32>
    %196 = arith.mulf %193, %195 : vector<8x256xf32>
    %197 = arith.addf %187, %196 : vector<8x256xf32>
    %c2_i32 = arith.constant 2 : i32
    %198 = tpu.dynamic_rotate %85 by %c2_i32 dim 1 : vector<8x256xf32>, i32 -> vector<8x256xf32>
    %c22 = arith.constant 22 : index
    %c0_75 = arith.constant 0 : index
    %c0_76 = arith.constant 0 : index
    %199 = vector.load %arg6[%c22, %c0_75, %c0_76] : memref<49x8x256xf32, #tpu.memory_space<vmem>>, vector<1x8x256xf32>
    %200 = vector.shape_cast %199 : vector<1x8x256xf32> to vector<8x256xf32>
    %201 = arith.mulf %198, %200 : vector<8x256xf32>
    %202 = arith.addf %192, %201 : vector<8x256xf32>
    %c1_i32 = arith.constant 1 : i32
    %203 = tpu.dynamic_rotate %85 by %c1_i32 dim 1 : vector<8x256xf32>, i32 -> vector<8x256xf32>
    %c23 = arith.constant 23 : index
    %c0_77 = arith.constant 0 : index
    %c0_78 = arith.constant 0 : index
    %204 = vector.load %arg6[%c23, %c0_77, %c0_78] : memref<49x8x256xf32, #tpu.memory_space<vmem>>, vector<1x8x256xf32>
    %205 = vector.shape_cast %204 : vector<1x8x256xf32> to vector<8x256xf32>
    %206 = arith.mulf %203, %205 : vector<8x256xf32>
    %207 = arith.addf %197, %206 : vector<8x256xf32>
    %c24 = arith.constant 24 : index
    %c0_79 = arith.constant 0 : index
    %c0_80 = arith.constant 0 : index
    %208 = vector.load %arg6[%c24, %c0_79, %c0_80] : memref<49x8x256xf32, #tpu.memory_space<vmem>>, vector<1x8x256xf32>
    %209 = vector.shape_cast %208 : vector<1x8x256xf32> to vector<8x256xf32>
    %210 = arith.mulf %85, %209 : vector<8x256xf32>
    %211 = arith.addf %202, %210 : vector<8x256xf32>
    %c255_i32 = arith.constant 255 : i32
    %212 = tpu.dynamic_rotate %85 by %c255_i32 dim 1 : vector<8x256xf32>, i32 -> vector<8x256xf32>
    %c25 = arith.constant 25 : index
    %c0_81 = arith.constant 0 : index
    %c0_82 = arith.constant 0 : index
    %213 = vector.load %arg6[%c25, %c0_81, %c0_82] : memref<49x8x256xf32, #tpu.memory_space<vmem>>, vector<1x8x256xf32>
    %214 = vector.shape_cast %213 : vector<1x8x256xf32> to vector<8x256xf32>
    %215 = arith.mulf %212, %214 : vector<8x256xf32>
    %216 = arith.addf %207, %215 : vector<8x256xf32>
    %c254_i32 = arith.constant 254 : i32
    %217 = tpu.dynamic_rotate %85 by %c254_i32 dim 1 : vector<8x256xf32>, i32 -> vector<8x256xf32>
    %c26 = arith.constant 26 : index
    %c0_83 = arith.constant 0 : index
    %c0_84 = arith.constant 0 : index
    %218 = vector.load %arg6[%c26, %c0_83, %c0_84] : memref<49x8x256xf32, #tpu.memory_space<vmem>>, vector<1x8x256xf32>
    %219 = vector.shape_cast %218 : vector<1x8x256xf32> to vector<8x256xf32>
    %220 = arith.mulf %217, %219 : vector<8x256xf32>
    %221 = arith.addf %211, %220 : vector<8x256xf32>
    %c253_i32 = arith.constant 253 : i32
    %222 = tpu.dynamic_rotate %85 by %c253_i32 dim 1 : vector<8x256xf32>, i32 -> vector<8x256xf32>
    %c27 = arith.constant 27 : index
    %c0_85 = arith.constant 0 : index
    %c0_86 = arith.constant 0 : index
    %223 = vector.load %arg6[%c27, %c0_85, %c0_86] : memref<49x8x256xf32, #tpu.memory_space<vmem>>, vector<1x8x256xf32>
    %224 = vector.shape_cast %223 : vector<1x8x256xf32> to vector<8x256xf32>
    %225 = arith.mulf %222, %224 : vector<8x256xf32>
    %226 = arith.addf %216, %225 : vector<8x256xf32>
    %c243_i32 = arith.constant 243 : i32
    %227 = tpu.dynamic_rotate %85 by %c243_i32 dim 1 : vector<8x256xf32>, i32 -> vector<8x256xf32>
    %c28 = arith.constant 28 : index
    %c0_87 = arith.constant 0 : index
    %c0_88 = arith.constant 0 : index
    %228 = vector.load %arg6[%c28, %c0_87, %c0_88] : memref<49x8x256xf32, #tpu.memory_space<vmem>>, vector<1x8x256xf32>
    %229 = vector.shape_cast %228 : vector<1x8x256xf32> to vector<8x256xf32>
    %230 = arith.mulf %227, %229 : vector<8x256xf32>
    %231 = arith.addf %221, %230 : vector<8x256xf32>
    %c242_i32 = arith.constant 242 : i32
    %232 = tpu.dynamic_rotate %85 by %c242_i32 dim 1 : vector<8x256xf32>, i32 -> vector<8x256xf32>
    %c29 = arith.constant 29 : index
    %c0_89 = arith.constant 0 : index
    %c0_90 = arith.constant 0 : index
    %233 = vector.load %arg6[%c29, %c0_89, %c0_90] : memref<49x8x256xf32, #tpu.memory_space<vmem>>, vector<1x8x256xf32>
    %234 = vector.shape_cast %233 : vector<1x8x256xf32> to vector<8x256xf32>
    %235 = arith.mulf %232, %234 : vector<8x256xf32>
    %236 = arith.addf %226, %235 : vector<8x256xf32>
    %c241_i32 = arith.constant 241 : i32
    %237 = tpu.dynamic_rotate %85 by %c241_i32 dim 1 : vector<8x256xf32>, i32 -> vector<8x256xf32>
    %c30 = arith.constant 30 : index
    %c0_91 = arith.constant 0 : index
    %c0_92 = arith.constant 0 : index
    %238 = vector.load %arg6[%c30, %c0_91, %c0_92] : memref<49x8x256xf32, #tpu.memory_space<vmem>>, vector<1x8x256xf32>
    %239 = vector.shape_cast %238 : vector<1x8x256xf32> to vector<8x256xf32>
    %240 = arith.mulf %237, %239 : vector<8x256xf32>
    %241 = arith.addf %231, %240 : vector<8x256xf32>
    %c240_i32 = arith.constant 240 : i32
    %242 = tpu.dynamic_rotate %85 by %c240_i32 dim 1 : vector<8x256xf32>, i32 -> vector<8x256xf32>
    %c31 = arith.constant 31 : index
    %c0_93 = arith.constant 0 : index
    %c0_94 = arith.constant 0 : index
    %243 = vector.load %arg6[%c31, %c0_93, %c0_94] : memref<49x8x256xf32, #tpu.memory_space<vmem>>, vector<1x8x256xf32>
    %244 = vector.shape_cast %243 : vector<1x8x256xf32> to vector<8x256xf32>
    %245 = arith.mulf %242, %244 : vector<8x256xf32>
    %246 = arith.addf %236, %245 : vector<8x256xf32>
    %c239_i32 = arith.constant 239 : i32
    %247 = tpu.dynamic_rotate %85 by %c239_i32 dim 1 : vector<8x256xf32>, i32 -> vector<8x256xf32>
    %c32 = arith.constant 32 : index
    %c0_95 = arith.constant 0 : index
    %c0_96 = arith.constant 0 : index
    %248 = vector.load %arg6[%c32, %c0_95, %c0_96] : memref<49x8x256xf32, #tpu.memory_space<vmem>>, vector<1x8x256xf32>
    %249 = vector.shape_cast %248 : vector<1x8x256xf32> to vector<8x256xf32>
    %250 = arith.mulf %247, %249 : vector<8x256xf32>
    %251 = arith.addf %241, %250 : vector<8x256xf32>
    %c238_i32 = arith.constant 238 : i32
    %252 = tpu.dynamic_rotate %85 by %c238_i32 dim 1 : vector<8x256xf32>, i32 -> vector<8x256xf32>
    %c33 = arith.constant 33 : index
    %c0_97 = arith.constant 0 : index
    %c0_98 = arith.constant 0 : index
    %253 = vector.load %arg6[%c33, %c0_97, %c0_98] : memref<49x8x256xf32, #tpu.memory_space<vmem>>, vector<1x8x256xf32>
    %254 = vector.shape_cast %253 : vector<1x8x256xf32> to vector<8x256xf32>
    %255 = arith.mulf %252, %254 : vector<8x256xf32>
    %256 = arith.addf %246, %255 : vector<8x256xf32>
    %c237_i32 = arith.constant 237 : i32
    %257 = tpu.dynamic_rotate %85 by %c237_i32 dim 1 : vector<8x256xf32>, i32 -> vector<8x256xf32>
    %c34 = arith.constant 34 : index
    %c0_99 = arith.constant 0 : index
    %c0_100 = arith.constant 0 : index
    %258 = vector.load %arg6[%c34, %c0_99, %c0_100] : memref<49x8x256xf32, #tpu.memory_space<vmem>>, vector<1x8x256xf32>
    %259 = vector.shape_cast %258 : vector<1x8x256xf32> to vector<8x256xf32>
    %260 = arith.mulf %257, %259 : vector<8x256xf32>
    %261 = arith.addf %251, %260 : vector<8x256xf32>
    %c227_i32 = arith.constant 227 : i32
    %262 = tpu.dynamic_rotate %85 by %c227_i32 dim 1 : vector<8x256xf32>, i32 -> vector<8x256xf32>
    %c35 = arith.constant 35 : index
    %c0_101 = arith.constant 0 : index
    %c0_102 = arith.constant 0 : index
    %263 = vector.load %arg6[%c35, %c0_101, %c0_102] : memref<49x8x256xf32, #tpu.memory_space<vmem>>, vector<1x8x256xf32>
    %264 = vector.shape_cast %263 : vector<1x8x256xf32> to vector<8x256xf32>
    %265 = arith.mulf %262, %264 : vector<8x256xf32>
    %266 = arith.addf %256, %265 : vector<8x256xf32>
    %c226_i32 = arith.constant 226 : i32
    %267 = tpu.dynamic_rotate %85 by %c226_i32 dim 1 : vector<8x256xf32>, i32 -> vector<8x256xf32>
    %c36 = arith.constant 36 : index
    %c0_103 = arith.constant 0 : index
    %c0_104 = arith.constant 0 : index
    %268 = vector.load %arg6[%c36, %c0_103, %c0_104] : memref<49x8x256xf32, #tpu.memory_space<vmem>>, vector<1x8x256xf32>
    %269 = vector.shape_cast %268 : vector<1x8x256xf32> to vector<8x256xf32>
    %270 = arith.mulf %267, %269 : vector<8x256xf32>
    %271 = arith.addf %261, %270 : vector<8x256xf32>
    %c225_i32 = arith.constant 225 : i32
    %272 = tpu.dynamic_rotate %85 by %c225_i32 dim 1 : vector<8x256xf32>, i32 -> vector<8x256xf32>
    %c37 = arith.constant 37 : index
    %c0_105 = arith.constant 0 : index
    %c0_106 = arith.constant 0 : index
    %273 = vector.load %arg6[%c37, %c0_105, %c0_106] : memref<49x8x256xf32, #tpu.memory_space<vmem>>, vector<1x8x256xf32>
    %274 = vector.shape_cast %273 : vector<1x8x256xf32> to vector<8x256xf32>
    %275 = arith.mulf %272, %274 : vector<8x256xf32>
    %276 = arith.addf %266, %275 : vector<8x256xf32>
    %c224_i32 = arith.constant 224 : i32
    %277 = tpu.dynamic_rotate %85 by %c224_i32 dim 1 : vector<8x256xf32>, i32 -> vector<8x256xf32>
    %c38 = arith.constant 38 : index
    %c0_107 = arith.constant 0 : index
    %c0_108 = arith.constant 0 : index
    %278 = vector.load %arg6[%c38, %c0_107, %c0_108] : memref<49x8x256xf32, #tpu.memory_space<vmem>>, vector<1x8x256xf32>
    %279 = vector.shape_cast %278 : vector<1x8x256xf32> to vector<8x256xf32>
    %280 = arith.mulf %277, %279 : vector<8x256xf32>
    %281 = arith.addf %271, %280 : vector<8x256xf32>
    %c223_i32 = arith.constant 223 : i32
    %282 = tpu.dynamic_rotate %85 by %c223_i32 dim 1 : vector<8x256xf32>, i32 -> vector<8x256xf32>
    %c39 = arith.constant 39 : index
    %c0_109 = arith.constant 0 : index
    %c0_110 = arith.constant 0 : index
    %283 = vector.load %arg6[%c39, %c0_109, %c0_110] : memref<49x8x256xf32, #tpu.memory_space<vmem>>, vector<1x8x256xf32>
    %284 = vector.shape_cast %283 : vector<1x8x256xf32> to vector<8x256xf32>
    %285 = arith.mulf %282, %284 : vector<8x256xf32>
    %286 = arith.addf %276, %285 : vector<8x256xf32>
    %c222_i32 = arith.constant 222 : i32
    %287 = tpu.dynamic_rotate %85 by %c222_i32 dim 1 : vector<8x256xf32>, i32 -> vector<8x256xf32>
    %c40 = arith.constant 40 : index
    %c0_111 = arith.constant 0 : index
    %c0_112 = arith.constant 0 : index
    %288 = vector.load %arg6[%c40, %c0_111, %c0_112] : memref<49x8x256xf32, #tpu.memory_space<vmem>>, vector<1x8x256xf32>
    %289 = vector.shape_cast %288 : vector<1x8x256xf32> to vector<8x256xf32>
    %290 = arith.mulf %287, %289 : vector<8x256xf32>
    %291 = arith.addf %281, %290 : vector<8x256xf32>
    %c221_i32 = arith.constant 221 : i32
    %292 = tpu.dynamic_rotate %85 by %c221_i32 dim 1 : vector<8x256xf32>, i32 -> vector<8x256xf32>
    %c41 = arith.constant 41 : index
    %c0_113 = arith.constant 0 : index
    %c0_114 = arith.constant 0 : index
    %293 = vector.load %arg6[%c41, %c0_113, %c0_114] : memref<49x8x256xf32, #tpu.memory_space<vmem>>, vector<1x8x256xf32>
    %294 = vector.shape_cast %293 : vector<1x8x256xf32> to vector<8x256xf32>
    %295 = arith.mulf %292, %294 : vector<8x256xf32>
    %296 = arith.addf %286, %295 : vector<8x256xf32>
    %c211_i32 = arith.constant 211 : i32
    %297 = tpu.dynamic_rotate %85 by %c211_i32 dim 1 : vector<8x256xf32>, i32 -> vector<8x256xf32>
    %c42 = arith.constant 42 : index
    %c0_115 = arith.constant 0 : index
    %c0_116 = arith.constant 0 : index
    %298 = vector.load %arg6[%c42, %c0_115, %c0_116] : memref<49x8x256xf32, #tpu.memory_space<vmem>>, vector<1x8x256xf32>
    %299 = vector.shape_cast %298 : vector<1x8x256xf32> to vector<8x256xf32>
    %300 = arith.mulf %297, %299 : vector<8x256xf32>
    %301 = arith.addf %291, %300 : vector<8x256xf32>
    %c210_i32 = arith.constant 210 : i32
    %302 = tpu.dynamic_rotate %85 by %c210_i32 dim 1 : vector<8x256xf32>, i32 -> vector<8x256xf32>
    %c43 = arith.constant 43 : index
    %c0_117 = arith.constant 0 : index
    %c0_118 = arith.constant 0 : index
    %303 = vector.load %arg6[%c43, %c0_117, %c0_118] : memref<49x8x256xf32, #tpu.memory_space<vmem>>, vector<1x8x256xf32>
    %304 = vector.shape_cast %303 : vector<1x8x256xf32> to vector<8x256xf32>
    %305 = arith.mulf %302, %304 : vector<8x256xf32>
    %306 = arith.addf %296, %305 : vector<8x256xf32>
    %c209_i32 = arith.constant 209 : i32
    %307 = tpu.dynamic_rotate %85 by %c209_i32 dim 1 : vector<8x256xf32>, i32 -> vector<8x256xf32>
    %c44 = arith.constant 44 : index
    %c0_119 = arith.constant 0 : index
    %c0_120 = arith.constant 0 : index
    %308 = vector.load %arg6[%c44, %c0_119, %c0_120] : memref<49x8x256xf32, #tpu.memory_space<vmem>>, vector<1x8x256xf32>
    %309 = vector.shape_cast %308 : vector<1x8x256xf32> to vector<8x256xf32>
    %310 = arith.mulf %307, %309 : vector<8x256xf32>
    %311 = arith.addf %301, %310 : vector<8x256xf32>
    %c208_i32 = arith.constant 208 : i32
    %312 = tpu.dynamic_rotate %85 by %c208_i32 dim 1 : vector<8x256xf32>, i32 -> vector<8x256xf32>
    %c45 = arith.constant 45 : index
    %c0_121 = arith.constant 0 : index
    %c0_122 = arith.constant 0 : index
    %313 = vector.load %arg6[%c45, %c0_121, %c0_122] : memref<49x8x256xf32, #tpu.memory_space<vmem>>, vector<1x8x256xf32>
    %314 = vector.shape_cast %313 : vector<1x8x256xf32> to vector<8x256xf32>
    %315 = arith.mulf %312, %314 : vector<8x256xf32>
    %316 = arith.addf %306, %315 : vector<8x256xf32>
    %c207_i32 = arith.constant 207 : i32
    %317 = tpu.dynamic_rotate %85 by %c207_i32 dim 1 : vector<8x256xf32>, i32 -> vector<8x256xf32>
    %c46 = arith.constant 46 : index
    %c0_123 = arith.constant 0 : index
    %c0_124 = arith.constant 0 : index
    %318 = vector.load %arg6[%c46, %c0_123, %c0_124] : memref<49x8x256xf32, #tpu.memory_space<vmem>>, vector<1x8x256xf32>
    %319 = vector.shape_cast %318 : vector<1x8x256xf32> to vector<8x256xf32>
    %320 = arith.mulf %317, %319 : vector<8x256xf32>
    %321 = arith.addf %311, %320 : vector<8x256xf32>
    %c206_i32 = arith.constant 206 : i32
    %322 = tpu.dynamic_rotate %85 by %c206_i32 dim 1 : vector<8x256xf32>, i32 -> vector<8x256xf32>
    %c47 = arith.constant 47 : index
    %c0_125 = arith.constant 0 : index
    %c0_126 = arith.constant 0 : index
    %323 = vector.load %arg6[%c47, %c0_125, %c0_126] : memref<49x8x256xf32, #tpu.memory_space<vmem>>, vector<1x8x256xf32>
    %324 = vector.shape_cast %323 : vector<1x8x256xf32> to vector<8x256xf32>
    %325 = arith.mulf %322, %324 : vector<8x256xf32>
    %326 = arith.addf %316, %325 : vector<8x256xf32>
    %c205_i32 = arith.constant 205 : i32
    %327 = tpu.dynamic_rotate %85 by %c205_i32 dim 1 : vector<8x256xf32>, i32 -> vector<8x256xf32>
    %c48 = arith.constant 48 : index
    %c0_127 = arith.constant 0 : index
    %c0_128 = arith.constant 0 : index
    %328 = vector.load %arg6[%c48, %c0_127, %c0_128] : memref<49x8x256xf32, #tpu.memory_space<vmem>>, vector<1x8x256xf32>
    %329 = vector.shape_cast %328 : vector<1x8x256xf32> to vector<8x256xf32>
    %330 = arith.mulf %327, %329 : vector<8x256xf32>
    %331 = arith.addf %321, %330 : vector<8x256xf32>
    %332 = arith.addf %331, %326 : vector<8x256xf32>
    %333 = vector.extract_strided_slice %332 {offsets = [0, 0], sizes = [4, 256], strides = [1, 1]} : vector<8x256xf32> to vector<4x256xf32>
    %334 = vector.extract_strided_slice %332 {offsets = [4, 0], sizes = [4, 256], strides = [1, 1]} : vector<8x256xf32> to vector<4x256xf32>
    %335 = arith.addf %333, %334 : vector<4x256xf32>
    %c0_129 = arith.constant 0 : index
    %336 = memref.load %arg7[%c0_129] : memref<1xf32, #tpu.memory_space<smem>>
    %337 = vector.broadcast %336 : f32 to vector<4x256xf32>
    %338 = arith.addf %335, %337 : vector<4x256xf32>
    %339 = arith.negf %338 : vector<4x256xf32>
    %340 = math.exp %339 : vector<4x256xf32>
    %cst_130 = arith.constant 1.000000e+00 : f32
    %341 = vector.broadcast %cst_130 : f32 to vector<4x256xf32>
    %342 = arith.addf %341, %340 : vector<4x256xf32>
    %343 = arith.divf %341, %342 : vector<4x256xf32>
    %344 = vector.extract_strided_slice %343 {offsets = [0, 0], sizes = [1, 256], strides = [1, 1]} : vector<4x256xf32> to vector<1x256xf32>
    %345 = vector.broadcast %344 : vector<1x256xf32> to vector<32x256xf32>
    %346 = arith.mulf %39, %345 : vector<32x256xf32>
    %c0_131 = arith.constant 0 : index
    %c0_132 = arith.constant 0 : index
    %347 = vector.load %arg8[%c0_131, %c0_132] : memref<128x256xf32, #tpu.memory_space<vmem>>, vector<32x256xf32>
    tpu.vector_store %arg8[%c0_131, %c0_132], %346 {strides = array<i32>} : memref<128x256xf32, #tpu.memory_space<vmem>>, vector<32x256xf32>,
    %348 = vector.extract_strided_slice %343 {offsets = [1, 0], sizes = [1, 256], strides = [1, 1]} : vector<4x256xf32> to vector<1x256xf32>
    %349 = vector.broadcast %348 : vector<1x256xf32> to vector<32x256xf32>
    %350 = arith.mulf %53, %349 : vector<32x256xf32>
    %c32_133 = arith.constant 32 : index
    %c0_134 = arith.constant 0 : index
    %351 = vector.load %arg8[%c32_133, %c0_134] : memref<128x256xf32, #tpu.memory_space<vmem>>, vector<32x256xf32>
    tpu.vector_store %arg8[%c32_133, %c0_134], %350 {strides = array<i32>} : memref<128x256xf32, #tpu.memory_space<vmem>>, vector<32x256xf32>,
    %352 = vector.extract_strided_slice %343 {offsets = [2, 0], sizes = [1, 256], strides = [1, 1]} : vector<4x256xf32> to vector<1x256xf32>
    %353 = vector.broadcast %352 : vector<1x256xf32> to vector<32x256xf32>
    %354 = arith.mulf %67, %353 : vector<32x256xf32>
    %c64 = arith.constant 64 : index
    %c0_135 = arith.constant 0 : index
    %355 = vector.load %arg8[%c64, %c0_135] : memref<128x256xf32, #tpu.memory_space<vmem>>, vector<32x256xf32>
    tpu.vector_store %arg8[%c64, %c0_135], %354 {strides = array<i32>} : memref<128x256xf32, #tpu.memory_space<vmem>>, vector<32x256xf32>,
    %356 = vector.extract_strided_slice %343 {offsets = [3, 0], sizes = [1, 256], strides = [1, 1]} : vector<4x256xf32> to vector<1x256xf32>
    %357 = vector.broadcast %356 : vector<1x256xf32> to vector<32x256xf32>
    %358 = arith.mulf %81, %357 : vector<32x256xf32>
    %c96 = arith.constant 96 : index
    %c0_136 = arith.constant 0 : index
    %359 = vector.load %arg8[%c96, %c0_136] : memref<128x256xf32, #tpu.memory_space<vmem>>, vector<32x256xf32>
    tpu.vector_store %arg8[%c96, %c0_136], %358 {strides = array<i32>} : memref<128x256xf32, #tpu.memory_space<vmem>>, vector<32x256xf32>,
    return
  }
  func.func @transform_0(%arg0: i32) -> (i32, i32) {
    %c0_i32 = arith.constant 0 : i32
    %c0_i32_0 = arith.constant 0 : i32
    return %arg0, %c0_i32 : i32, i32
  }
  func.func @transform_1(%arg0: i32) -> (i32, i32) {
    %c0_i32 = arith.constant 0 : i32
    %c0_i32_0 = arith.constant 0 : i32
    %c0_i32_1 = arith.constant 0 : i32
    return %c0_i32, %c0_i32_0 : i32, i32
  }
  func.func @transform_2(%arg0: i32) -> (i32, i32) {
    %c0_i32 = arith.constant 0 : i32
    %c0_i32_0 = arith.constant 0 : i32
    %c0_i32_1 = arith.constant 0 : i32
    return %c0_i32, %c0_i32_0 : i32, i32
  }
  func.func @transform_3(%arg0: i32) -> (i32, i32) {
    %c0_i32 = arith.constant 0 : i32
    %c0_i32_0 = arith.constant 0 : i32
    %c0_i32_1 = arith.constant 0 : i32
    return %c0_i32, %c0_i32_0 : i32, i32
  }
  func.func @transform_4(%arg0: i32) -> (i32, i32) {
    %c0_i32 = arith.constant 0 : i32
    %c0_i32_0 = arith.constant 0 : i32
    %c0_i32_1 = arith.constant 0 : i32
    return %c0_i32, %c0_i32_0 : i32, i32
  }
  func.func @transform_5(%arg0: i32) -> (i32, i32, i32) {
    %c0_i32 = arith.constant 0 : i32
    %c0_i32_0 = arith.constant 0 : i32
    %c0_i32_1 = arith.constant 0 : i32
    %c0_i32_2 = arith.constant 0 : i32
    return %c0_i32, %c0_i32_0, %c0_i32_1 : i32, i32, i32
  }
  func.func @transform_6(%arg0: i32) -> i32 {
    %c0_i32 = arith.constant 0 : i32
    %c0_i32_0 = arith.constant 0 : i32
    return %c0_i32 : i32
  }
  func.func @transform_7(%arg0: i32) -> (i32, i32) {
    %c0_i32 = arith.constant 0 : i32
    %c0_i32_0 = arith.constant 0 : i32
    return %arg0, %c0_i32 : i32, i32
  }
}

</mosaic_0001>

<llo_original>
// kernel: tpu_custom_call.1
$region0: #{tpu_custom_call.1}
  #allocation0 [shape = 'u32[]', space=smem, size = 0x4, offset = 0x4, fixed_abs, tag = 'smem constant byte address 0x4 - core index']
  #allocation1 [shape = 'u32[72,128]{1,0:T(1,128)}', space=vmem, size = 0x9000, scoped, tag = 'internal scratch']
  #allocation2 [shape = 'f32[1]{0:T(128)S(6)}', space=smem, size = 0x200, scoped, tag = 'scoped memory for tpu_custom_call.1']
  %s0 = inlined_call_operand.hbm [shape: f32[256,256], index: 0, kind: input, shape index: {}]
  %s1 = inlined_call_operand.vmem [shape: f32[2,32], index: 1, kind: input, shape index: {}]
  %s2 = inlined_call_operand.vmem [shape: f32[2,1], index: 2, kind: input, shape index: {}]
  %s3 = inlined_call_operand.vmem [shape: f32[32,2], index: 3, kind: input, shape index: {}]
  %s4 = inlined_call_operand.vmem [shape: f32[32,1], index: 4, kind: input, shape index: {}]
  %s5 = inlined_call_operand.hbm [shape: f32[49,8,256], index: 5, kind: input, shape index: {}]
  %s6 = inlined_call_operand.<no memory space> [shape: f32[1], index: 6, kind: input, shape index: {}]
  %s7 = inlined_call_operand.hbm [shape: f32[256,256], index: 7, kind: output, shape index: {}]
  %s8 = sld [smem:[#allocation0]]
  $region69: #{tpu_custom_call.1} parent=0
    _
  %s10 = ssub.s32 1, %s8
  %s11 = scalar_select 0, %s10, %s8
  %12 = sst [smem:[#allocation2]] %s6
  $region1: #{tpu_custom_call.1} parent=0
    #allocation3 [shape = 'u8[262144]{0}', space=vmem, size = 0x40000, scoped, tag = 'input window, operand 0']
    #allocation4 [shape = 's32[2]{0}', space=sflag, size = 0x8, scoped, tag = 'scoped memory for tpu_custom_call.1']
    #allocation5 [shape = 's32[2]{0}', space=sflag, size = 0x8, scoped, tag = 'scoped memory for tpu_custom_call.1']
    #allocation6 [shape = 'u8[401408]{0}', space=vmem, size = 0x62000, scoped, tag = 'input window, operand 5, single buffered']
    #allocation7 [shape = 's32[1]{0}', space=sflag, size = 0x4, scoped, tag = 'scoped memory for tpu_custom_call.1']
    #allocation8 [shape = 'u8[262144]{0}', space=vmem, size = 0x40000, scoped, tag = 'output window, operand 0']
    %13 = vsyncpa [#allocation4], 0
    %s14 = scalar_lea.sflag [#allocation4], 1
    %15 = vsyncpa %s14, 0
    %16 = vsyncpa [#allocation7], 0
    %17 = vsyncpa [#allocation5], 0
    %s18 = scalar_lea.sflag [#allocation5], 1
    %19 = vsyncpa %s18, 0
    loop: start=0, step=1, limit=4
    $region2: #{tpu_custom_call.1} parent=1 // loop_pre_header
      _
    $region3: #{tpu_custom_call.1} parent=1 // loop_header
      %s21 = sphi 0, %s25
      %p22 = scmp.ge.s32.totalorder %s21, 4
      %s31 = sphi 0, %s33
      %s34 = sphi 0, %s31
      %s35 = sphi 0, %s34
      %s51 = sphi 0, %s35
      %s55 = sphi 0, %s55
      %s57 = sphi 0, %s55
      %s58 = sphi 0, %s57
      %s72 = sphi 0, %s58
      %s76 = sphi 0, %s76
      %s78 = sphi 0, %s76
      %s79 = sphi 0, %s78
      %s93 = sphi 0, %s79
      %s97 = sphi 0, %s97
      %s99 = sphi 0, %s97
      %s100 = sphi 0, %s99
      %s114 = sphi 0, %s100
      %s118 = sphi 0, %s118
      %s120 = sphi 0, %s118
      %s121 = sphi 0, %s120
      %s135 = sphi 0, %s121
      %s139 = sphi 0, %s139
      %s141 = sphi 0, %s139
      %s142 = sphi 0, %s141
      %s156 = sphi 0, %s142
      %s160 = sphi 0, %s160
      %s162 = sphi 0, %s160
      %s163 = sphi 0, %s162
      %s177 = sphi 0, %s163
      %s183 = sphi 0, %s185
      %s186 = sphi 0, %s183
      %s187 = sphi 0, %s186
      %s203 = sphi 0, %s187
    $region4: #{tpu_custom_call.1} parent=1 // loop_header_branch
      %24 = sbr.rel (%p22) target = $region8
    $region5: #{tpu_custom_call.1} parent=1 // loop_body
      %s26 = ssub.s32 %s21, 1
      %s27 = ssub.s32 %s21, 2
      %s28 = sadd.s32 %s21, 1
      %s29 = ssub.s32 %s21, %s28
      %p30 = scmp.eq.s32.totalorder %s29, 0
      %s32 = sadd.s32 %s31, 1
      %s33 = scalar_select %p30, %s31, %s32
      %p36 = pneg %p30
      %p37 = scmp.eq.s32.totalorder %s21, 1
      %p38 = por %p36, %p37
      %p39 = scmp.ne.s32.totalorder %s31, %s34
      %p40 = scmp.eq.s32.totalorder %s21, 0
      %p41 = por %p39, %p40
      %p42 = scmp.ne.s32.totalorder %s31, %s34
      %p43 = scmp.eq.s32.totalorder %s26, 1
      %p44 = por %p42, %p43
      %p45 = scmp.ne.s32.totalorder %s34, %s35
      %p46 = scmp.eq.s32.totalorder %s26, 0
      %p47 = por %p45, %p46
      %p48 = scmp.ne.s32.totalorder %s34, %s35
      %p49 = scmp.eq.s32.totalorder %s27, 1
      %p50 = por %p48, %p49
      %p52 = scmp.ne.s32.totalorder %s35, %s51
      %p53 = scmp.eq.s32.totalorder %s27, 0
      %p54 = por %p52, %p53
      %s56 = sadd.s32 %s55, 1
      %p59 = scmp.eq.s32.totalorder %s21, 1
      %p60 = scmp.ne.s32.totalorder %s55, %s57
      %p61 = scmp.eq.s32.totalorder %s21, 0
      %p62 = por %p60, %p61
      %p63 = scmp.ne.s32.totalorder %s55, %s57
      %p64 = scmp.eq.s32.totalorder %s26, 1
      %p65 = por %p63, %p64
      %p66 = scmp.ne.s32.totalorder %s57, %s58
      %p67 = scmp.eq.s32.totalorder %s26, 0
      %p68 = por %p66, %p67
      %p69 = scmp.ne.s32.totalorder %s57, %s58
      %p70 = scmp.eq.s32.totalorder %s27, 1
      %p71 = por %p69, %p70
      %p73 = scmp.ne.s32.totalorder %s58, %s72
      %p74 = scmp.eq.s32.totalorder %s27, 0
      %p75 = por %p73, %p74
      %s77 = sadd.s32 %s76, 1
      %p80 = scmp.eq.s32.totalorder %s21, 1
      %p81 = scmp.ne.s32.totalorder %s76, %s78
      %p82 = scmp.eq.s32.totalorder %s21, 0
      %p83 = por %p81, %p82
      %p84 = scmp.ne.s32.totalorder %s76, %s78
      %p85 = scmp.eq.s32.totalorder %s26, 1
      %p86 = por %p84, %p85
      %p87 = scmp.ne.s32.totalorder %s78, %s79
      %p88 = scmp.eq.s32.totalorder %s26, 0
      %p89 = por %p87, %p88
      %p90 = scmp.ne.s32.totalorder %s78, %s79
      %p91 = scmp.eq.s32.totalorder %s27, 1
      %p92 = por %p90, %p91
      %p94 = scmp.ne.s32.totalorder %s79, %s93
      %p95 = scmp.eq.s32.totalorder %s27, 0
      %p96 = por %p94, %p95
      %s98 = sadd.s32 %s97, 1
      %p101 = scmp.eq.s32.totalorder %s21, 1
      %p102 = scmp.ne.s32.totalorder %s97, %s99
      %p103 = scmp.eq.s32.totalorder %s21, 0
      %p104 = por %p102, %p103
      %p105 = scmp.ne.s32.totalorder %s97, %s99
      %p106 = scmp.eq.s32.totalorder %s26, 1
      %p107 = por %p105, %p106
      %p108 = scmp.ne.s32.totalorder %s99, %s100
      %p109 = scmp.eq.s32.totalorder %s26, 0
      %p110 = por %p108, %p109
      %p111 = scmp.ne.s32.totalorder %s99, %s100
      %p112 = scmp.eq.s32.totalorder %s27, 1
      %p113 = por %p111, %p112
      %p115 = scmp.ne.s32.totalorder %s100, %s114
      %p116 = scmp.eq.s32.totalorder %s27, 0
      %p117 = por %p115, %p116
      %s119 = sadd.s32 %s118, 1
      %p122 = scmp.eq.s32.totalorder %s21, 1
      %p123 = scmp.ne.s32.totalorder %s118, %s120
      %p124 = scmp.eq.s32.totalorder %s21, 0
      %p125 = por %p123, %p124
      %p126 = scmp.ne.s32.totalorder %s118, %s120
      %p127 = scmp.eq.s32.totalorder %s26, 1
      %p128 = por %p126, %p127
      %p129 = scmp.ne.s32.totalorder %s120, %s121
      %p130 = scmp.eq.s32.totalorder %s26, 0
      %p131 = por %p129, %p130
      %p132 = scmp.ne.s32.totalorder %s120, %s121
      %p133 = scmp.eq.s32.totalorder %s27, 1
      %p134 = por %p132, %p133
      %p136 = scmp.ne.s32.totalorder %s121, %s135
      %p137 = scmp.eq.s32.totalorder %s27, 0
      %p138 = por %p136, %p137
      %s140 = sadd.s32 %s139, 1
      %p143 = scmp.eq.s32.totalorder %s21, 1
      %p144 = scmp.ne.s32.totalorder %s139, %s141
      %p145 = scmp.eq.s32.totalorder %s21, 0
      %p146 = por %p144, %p145
      %p147 = scmp.ne.s32.totalorder %s139, %s141
      %p148 = scmp.eq.s32.totalorder %s26, 1
      %p149 = por %p147, %p148
      %p150 = scmp.ne.s32.totalorder %s141, %s142
      %p151 = scmp.eq.s32.totalorder %s26, 0
      %p152 = por %p150, %p151
      %p153 = scmp.ne.s32.totalorder %s141, %s142
      %p154 = scmp.eq.s32.totalorder %s27, 1
      %p155 = por %p153, %p154
      %p157 = scmp.ne.s32.totalorder %s142, %s156
      %p158 = scmp.eq.s32.totalorder %s27, 0
      %p159 = por %p157, %p158
      %s161 = sadd.s32 %s160, 1
      %p164 = scmp.eq.s32.totalorder %s21, 1
      %p165 = scmp.ne.s32.totalorder %s160, %s162
      %p166 = scmp.eq.s32.totalorder %s21, 0
      %p167 = por %p165, %p166
      %p168 = scmp.ne.s32.totalorder %s160, %s162
      %p169 = scmp.eq.s32.totalorder %s26, 1
      %p170 = por %p168, %p169
      %p171 = scmp.ne.s32.totalorder %s162, %s163
      %p172 = scmp.eq.s32.totalorder %s26, 0
      %p173 = por %p171, %p172
      %p174 = scmp.ne.s32.totalorder %s162, %s163
      %p175 = scmp.eq.s32.totalorder %s27, 1
      %p176 = por %p174, %p175
      %p178 = scmp.ne.s32.totalorder %s163, %s177
      %p179 = scmp.eq.s32.totalorder %s27, 0
      %p180 = por %p178, %p179
      %s181 = ssub.s32 %s21, %s28
      %p182 = scmp.eq.s32.totalorder %s181, 0
      %s184 = sadd.s32 %s183, 1
      %s185 = scalar_select %p182, %s183, %s184
      %p188 = pneg %p182
      %p189 = scmp.eq.s32.totalorder %s21, 1
      %p190 = por %p188, %p189
      %p191 = scmp.ne.s32.totalorder %s183, %s186
      %p192 = scmp.eq.s32.totalorder %s21, 0
      %p193 = por %p191, %p192
      %p194 = scmp.ne.s32.totalorder %s183, %s186
      %p195 = scmp.eq.s32.totalorder %s26, 1
      %p196 = por %p194, %p195
      %p197 = scmp.ne.s32.totalorder %s186, %s187
      %p198 = scmp.eq.s32.totalorder %s26, 0
      %p199 = por %p197, %p198
      %p200 = scmp.ne.s32.totalorder %s186, %s187
      %p201 = scmp.eq.s32.totalorder %s27, 1
      %p202 = por %p200, %p201
      %p204 = scmp.ne.s32.totalorder %s187, %s203
      %p205 = scmp.eq.s32.totalorder %s27, 0
      %p206 = por %p204, %p205
      %p207 = scmp.le.s32.totalorder 1, %s21
      %p208 = scmp.lt.s32.totalorder %s21, 3
      %p209 = pnand %p207, %p208
      %p210 = pneg %p209
      // Predicated region
      $region9: #{tpu_custom_call.1} parent=5 // pred_check
        _
      $region10: #{tpu_custom_call.1} parent=5 // pred_check_branch
        %212 = sbr.rel (%p209) target = $region12
      $region11: #{tpu_custom_call.1} parent=5 // pred_region
        %s213 = ssub.s32 %s21, 1
        // Predicated region
        $region13: #{tpu_custom_call.1} parent=11 // pred_check
          %p214 = pneg %p68
        $region14: #{tpu_custom_call.1} parent=11 // pred_check_branch
          %216 = sbr.rel (%p214) target = $region16
        $region15: #{tpu_custom_call.1} parent=11 // pred_region
          _
        $region16: #{tpu_custom_call.1} parent=11 // pred_fallthru
          _
        // Predicated region
        $region17: #{tpu_custom_call.1} parent=11 // pred_check
          %p217 = pneg %p89
        $region18: #{tpu_custom_call.1} parent=11 // pred_check_branch
          %219 = sbr.rel (%p217) target = $region20
        $region19: #{tpu_custom_call.1} parent=11 // pred_region
          _
        $region20: #{tpu_custom_call.1} parent=11 // pred_fallthru
          _
        // Predicated region
        $region21: #{tpu_custom_call.1} parent=11 // pred_check
          %p220 = pneg %p110
        $region22: #{tpu_custom_call.1} parent=11 // pred_check_branch
          %222 = sbr.rel (%p220) target = $region24
        $region23: #{tpu_custom_call.1} parent=11 // pred_region
          _
        $region24: #{tpu_custom_call.1} parent=11 // pred_fallthru
          _
        // Predicated region
        $region25: #{tpu_custom_call.1} parent=11 // pred_check
          %p223 = pneg %p131
        $region26: #{tpu_custom_call.1} parent=11 // pred_check_branch
          %225 = sbr.rel (%p223) target = $region28
        $region27: #{tpu_custom_call.1} parent=11 // pred_region
          _
        $region28: #{tpu_custom_call.1} parent=11 // pred_fallthru
          _
        // Predicated region
        $region29: #{tpu_custom_call.1} parent=11 // pred_check
          %p226 = pneg %p152
        $region30: #{tpu_custom_call.1} parent=11 // pred_check_branch
          %228 = sbr.rel (%p226) target = $region32
        $region31: #{tpu_custom_call.1} parent=11 // pred_region
          %230 = vsyncadd [#allocation7], 0
          %s231 = sshll.u32 %s5, 4
          %s232 = int_to_ptr.hbm [resolvable:$true] %s231
          %s233 = sshll.u32 [#allocation6], 4
          %s234 = int_to_ptr.vmem [resolvable:$true] %s233
          %239 = dma.hbm_to_vmem [thread:$0]  %s232, 12544, %s234, [#allocation7], 256, 256, 16
        $region32: #{tpu_custom_call.1} parent=11 // pred_fallthru
          _
        // Predicated region
        $region33: #{tpu_custom_call.1} parent=11 // pred_check
          %p240 = pneg %p173
        $region34: #{tpu_custom_call.1} parent=11 // pred_check_branch
          %242 = sbr.rel (%p240) target = $region36
        $region35: #{tpu_custom_call.1} parent=11 // pred_region
          _
        $region36: #{tpu_custom_call.1} parent=11 // pred_fallthru
          _
      $region12: #{tpu_custom_call.1} parent=5 // pred_fallthru
        _
      %p243 = scmp.lt.s32.totalorder %s21, 2
      // Predicated region
      $region37: #{tpu_custom_call.1} parent=5 // pred_check
        %p244 = pneg %p243
      $region38: #{tpu_custom_call.1} parent=5 // pred_check_branch
        %246 = sbr.rel (%p244) target = $region40
      $region39: #{tpu_custom_call.1} parent=5 // pred_region
        // Predicated region
        $region41: #{tpu_custom_call.1} parent=39 // pred_check
          %p247 = pneg %p41
        $region42: #{tpu_custom_call.1} parent=39 // pred_check_branch
          %249 = sbr.rel (%p247) target = $region44
        $region43: #{tpu_custom_call.1} parent=39 // pred_region
          %s250 = sand.u32 %s31, 1
          %s251 = scalar_lea.sflag [#allocation4], %s250
          %s252 = sand.u32 %s31, 1
          %s253 = smul.addr %s252, 256
          %s254 = scalar_lea.vmem [#allocation3], %s253
          %s255 = smul.u32 16, %s21
          %257 = vsyncadd %s251, 0
          %s258 = smul.addr %s255, 2
          %s259 = smul.addr %s258, 8
          %s260 = scalar_lea.hbm %s0, %s259
          %s261 = sshll.u32 %s260, 4
          %s262 = int_to_ptr.hbm [resolvable:$true] %s261
          %s263 = sshll.u32 %s254, 4
          %s264 = int_to_ptr.vmem [resolvable:$true] %s263
          %269 = dma.hbm_to_vmem [thread:$0]  %s262, 4096, %s264, %s251, 256, 256, 16
        $region44: #{tpu_custom_call.1} parent=39 // pred_fallthru
          _
      $region40: #{tpu_custom_call.1} parent=5 // pred_fallthru
        _
      %p270 = scmp.le.s32.totalorder 1, %s21
      %p271 = scmp.lt.s32.totalorder %s21, 3
      %p272 = pnand %p270, %p271
      %p273 = pneg %p272
      // Predicated region
      $region45: #{tpu_custom_call.1} parent=5 // pred_check
        _
      $region46: #{tpu_custom_call.1} parent=5 // pred_check_branch
        %275 = sbr.rel (%p272) target = $region48
      $region47: #{tpu_custom_call.1} parent=5 // pred_region
        %s276 = ssub.s32 %s21, 1
        %s277 = sand.u32 %s34, 1
        %s278 = scalar_lea.sflag [#allocation4], %s277
        %s279 = sand.u32 %s34, 1
        %s280 = smul.addr %s279, 256
        %s281 = scalar_lea.vmem [#allocation3], %s280
        // Predicated region
        $region49: #{tpu_custom_call.1} parent=47 // pred_check
          %p282 = pneg %p47
        $region50: #{tpu_custom_call.1} parent=47 // pred_check_branch
          %284 = sbr.rel (%p282) target = $region52
        $region51: #{tpu_custom_call.1} parent=47 // pred_region
          %286 = dma.done %s278, 4096
        $region52: #{tpu_custom_call.1} parent=47 // pred_fallthru
          _
        // Predicated region
        $region53: #{tpu_custom_call.1} parent=47 // pred_check
          %p287 = pneg %p152
        $region54: #{tpu_custom_call.1} parent=47 // pred_check_branch
          %289 = sbr.rel (%p287) target = $region56
        $region55: #{tpu_custom_call.1} parent=47 // pred_region
          %291 = dma.done [#allocation7], 12544
        $region56: #{tpu_custom_call.1} parent=47 // pred_fallthru
          _
        %s292 = sand.u32 %s34, 1
        %s293 = scalar_lea.sflag [#allocation4], %s292
        %s294 = sand.u32 %s34, 1
        %s295 = smul.addr %s294, 256
        %s296 = scalar_lea.vmem [#allocation3], %s295
        %p297 = pneg %p47
        %p298 = pneg %p44
        %p299 = pneg %p68
        %p300 = pneg %p65
        %p301 = pneg %p89
        %p302 = pneg %p86
        %p303 = pneg %p110
        %p304 = pneg %p107
        %p305 = pneg %p131
        %p306 = pneg %p128
        %p307 = pneg %p152
        %p308 = pneg %p149
        %p309 = pneg %p173
        %p310 = pneg %p170
        %p311 = pneg %p199
        %p312 = pneg %p196
        %s313 = sand.u32 %s186, 1
        %s314 = scalar_lea.sflag [#allocation5], %s313
        %s315 = sand.u32 %s186, 1
        %s316 = smul.addr %s315, 256
        %s317 = scalar_lea.vmem [#allocation8], %s316
        %s318 = smul.u32 16, %s26
        %s319 = smul.u32 16, %s26
        %v320 = vld [vmem:[%s281] sm:$0xff]
        %v321 = vld [vmem:[%s281 + $0x8] sm:$0xff]
        %v322 = vld [vmem:[%s281 + $0x10] sm:$0xff]
        %v323 = vld [vmem:[%s281 + $0x18] sm:$0xff]
        %v324 = vld [vmem:[%s281 + $0x20] sm:$0xff]
        %v325 = vld [vmem:[%s281 + $0x28] sm:$0xff]
        %v326 = vld [vmem:[%s281 + $0x30] sm:$0xff]
        %v327 = vld [vmem:[%s281 + $0x38] sm:$0xff]
        %v328 = vld [vmem:[%s281 + $0x40] sm:$0xff]
        %v329 = vld [vmem:[%s281 + $0x48] sm:$0xff]
        %v330 = vld [vmem:[%s281 + $0x50] sm:$0xff]
        %v331 = vld [vmem:[%s281 + $0x58] sm:$0xff]
        %v332 = vld [vmem:[%s281 + $0x60] sm:$0xff]
        %v333 = vld [vmem:[%s281 + $0x68] sm:$0xff]
        %v334 = vld [vmem:[%s281 + $0x70] sm:$0xff]
        %v335 = vld [vmem:[%s281 + $0x78] sm:$0xff]
        %v336 = vld [vmem:[%s281 + $0x80] sm:$0xff]
        %v337 = vld [vmem:[%s281 + $0x88] sm:$0xff]
        %v338 = vld [vmem:[%s281 + $0x90] sm:$0xff]
        %v339 = vld [vmem:[%s281 + $0x98] sm:$0xff]
        %v340 = vld [vmem:[%s281 + $0xa0] sm:$0xff]
        %v341 = vld [vmem:[%s281 + $0xa8] sm:$0xff]
        %v342 = vld [vmem:[%s281 + $0xb0] sm:$0xff]
        %v343 = vld [vmem:[%s281 + $0xb8] sm:$0xff]
        %v344 = vld [vmem:[%s281 + $0xc0] sm:$0xff]
        %v345 = vld [vmem:[%s281 + $0xc8] sm:$0xff]
        %v346 = vld [vmem:[%s281 + $0xd0] sm:$0xff]
        %v347 = vld [vmem:[%s281 + $0xd8] sm:$0xff]
        %v348 = vld [vmem:[%s281 + $0xe0] sm:$0xff]
        %v349 = vld [vmem:[%s281 + $0xe8] sm:$0xff]
        %v350 = vld [vmem:[%s281 + $0xf0] sm:$0xff]
        %v351 = vld [vmem:[%s281 + $0xf8] sm:$0xff]
        %352 = vmatpush.msra.mxu0 1.0
        %353 = vmatpush.msra.mxu0 1.0
        %354 = vmatpush.msra.mxu0 1.0
        %355 = vmatpush.msra.mxu0 1.0
        %356 = vmatpush.msra.mxu0 1.0
        %357 = vmatpush.msra.mxu0 1.0
        %358 = vmatpush.msra.mxu0 1.0
        %359 = vmatpush.msra.mxu0 1.0
        %360 = vmatpush.msra.mxu0 1.0
        %361 = vmatpush.msra.mxu0 1.0
        %362 = vmatpush.msra.mxu0 1.0
        %363 = vmatpush.msra.mxu0 1.0
        %364 = vmatpush.msra.mxu0 1.0
        %365 = vmatpush.msra.mxu0 1.0
        %366 = vmatpush.msra.mxu0 1.0
        %367 = vmatpush.msra.mxu0 1.0
        %368 = vmatmul.f32.gmra.mxu0 %v320
        %v369 = vpop.f32.mrf.mxu0
        %v370 = vadd.f32 0.0, %v369
        %371 = vmatmul.f32.gmra.mxu0 %v322
        %v372 = vpop.f32.mrf.mxu0
        %v373 = vadd.f32 0.0, %v372
        %374 = vmatmul.f32.gmra.mxu0 %v324
        %v375 = vpop.f32.mrf.mxu0
        %v376 = vadd.f32 0.0, %v375
        %377 = vmatmul.f32.gmra.mxu0 %v326
        %v378 = vpop.f32.mrf.mxu0
        %v379 = vadd.f32 0.0, %v378
        %380 = vmatmul.f32.gmra.mxu0 %v328
        %v381 = vpop.f32.mrf.mxu0
        %v382 = vadd.f32 0.0, %v381
        %383 = vmatmul.f32.gmra.mxu0 %v330
        %v384 = vpop.f32.mrf.mxu0
        %v385 = vadd.f32 0.0, %v384
        %386 = vmatmul.f32.gmra.mxu0 %v332
        %v387 = vpop.f32.mrf.mxu0
        %v388 = vadd.f32 0.0, %v387
        %389 = vmatmul.f32.gmra.mxu0 %v334
        %v390 = vpop.f32.mrf.mxu0
        %v391 = vadd.f32 0.0, %v390
        %392 = vmatmul.f32.gmra.mxu0 %v336
        %v393 = vpop.f32.mrf.mxu0
        %v394 = vadd.f32 0.0, %v393
        %395 = vmatmul.f32.gmra.mxu0 %v338
        %v396 = vpop.f32.mrf.mxu0
        %v397 = vadd.f32 0.0, %v396
        %398 = vmatmul.f32.gmra.mxu0 %v340
        %v399 = vpop.f32.mrf.mxu0
        %v400 = vadd.f32 0.0, %v399
        %401 = vmatmul.f32.gmra.mxu0 %v342
        %v402 = vpop.f32.mrf.mxu0
        %v403 = vadd.f32 0.0, %v402
        %404 = vmatmul.f32.gmra.mxu0 %v344
        %v405 = vpop.f32.mrf.mxu0
        %v406 = vadd.f32 0.0, %v405
        %407 = vmatmul.f32.gmra.mxu0 %v346
        %v408 = vpop.f32.mrf.mxu0
        %v409 = vadd.f32 0.0, %v408
        %410 = vmatmul.f32.gmra.mxu0 %v348
        %v411 = vpop.f32.mrf.mxu0
        %v412 = vadd.f32 0.0, %v411
        %413 = vmatmul.f32.gmra.mxu0 %v350
        %v414 = vpop.f32.mrf.mxu0
        %v415 = vadd.f32 0.0, %v414
        %416 = vdwg.mxu0
        %417 = vmatpush.msra.mxu0 1.0
        %418 = vmatpush.msra.mxu0 1.0
        %419 = vmatpush.msra.mxu0 1.0
        %420 = vmatpush.msra.mxu0 1.0
        %421 = vmatpush.msra.mxu0 1.0
        %422 = vmatpush.msra.mxu0 1.0
        %423 = vmatpush.msra.mxu0 1.0
        %424 = vmatpush.msra.mxu0 1.0
        %425 = vmatpush.msra.mxu0 1.0
        %426 = vmatpush.msra.mxu0 1.0
        %427 = vmatpush.msra.mxu0 1.0
        %428 = vmatpush.msra.mxu0 1.0
        %429 = vmatpush.msra.mxu0 1.0
        %430 = vmatpush.msra.mxu0 1.0
        %431 = vmatpush.msra.mxu0 1.0
        %432 = vmatpush.msra.mxu0 1.0
        %433 = vmatmul.f32.gmra.mxu0 %v321
        %v434 = vpop.f32.mrf.mxu0
        %v435 = vadd.f32 %v370, %v434
        %436 = vmatmul.f32.gmra.mxu0 %v323
        %v437 = vpop.f32.mrf.mxu0
        %v438 = vadd.f32 %v373, %v437
        %439 = vmatmul.f32.gmra.mxu0 %v325
        %v440 = vpop.f32.mrf.mxu0
        %v441 = vadd.f32 %v376, %v440
        %442 = vmatmul.f32.gmra.mxu0 %v327
        %v443 = vpop.f32.mrf.mxu0
        %v444 = vadd.f32 %v379, %v443
        %445 = vmatmul.f32.gmra.mxu0 %v329
        %v446 = vpop.f32.mrf.mxu0
        %v447 = vadd.f32 %v382, %v446
        %448 = vmatmul.f32.gmra.mxu0 %v331
        %v449 = vpop.f32.mrf.mxu0
        %v450 = vadd.f32 %v385, %v449
        %451 = vmatmul.f32.gmra.mxu0 %v333
        %v452 = vpop.f32.mrf.mxu0
        %v453 = vadd.f32 %v388, %v452
        %454 = vmatmul.f32.gmra.mxu0 %v335
        %v455 = vpop.f32.mrf.mxu0
        %v456 = vadd.f32 %v391, %v455
        %457 = vmatmul.f32.gmra.mxu0 %v337
        %v458 = vpop.f32.mrf.mxu0
        %v459 = vadd.f32 %v394, %v458
        %460 = vmatmul.f32.gmra.mxu0 %v339
        %v461 = vpop.f32.mrf.mxu0
        %v462 = vadd.f32 %v397, %v461
        %463 = vmatmul.f32.gmra.mxu0 %v341
        %v464 = vpop.f32.mrf.mxu0
        %v465 = vadd.f32 %v400, %v464
        %466 = vmatmul.f32.gmra.mxu0 %v343
        %v467 = vpop.f32.mrf.mxu0
        %v468 = vadd.f32 %v403, %v467
        %469 = vmatmul.f32.gmra.mxu0 %v345
        %v470 = vpop.f32.mrf.mxu0
        %v471 = vadd.f32 %v406, %v470
        %472 = vmatmul.f32.gmra.mxu0 %v347
        %v473 = vpop.f32.mrf.mxu0
        %v474 = vadd.f32 %v409, %v473
        %475 = vmatmul.f32.gmra.mxu0 %v349
        %v476 = vpop.f32.mrf.mxu0
        %v477 = vadd.f32 %v412, %v476
        %478 = vmatmul.f32.gmra.mxu0 %v351
        %v479 = vpop.f32.mrf.mxu0
        %v480 = vadd.f32 %v415, %v479
        %481 = vdwg.mxu0
        %v482 = vmul.f32 %v435, 0.00390625
        %v483 = vmul.f32 %v438, 0.00390625
        %v484 = vmul.f32 %v441, 0.00390625
        %v485 = vmul.f32 %v444, 0.00390625
        %v486 = vmul.f32 %v447, 0.00390625
        %v487 = vmul.f32 %v450, 0.00390625
        %v488 = vmul.f32 %v453, 0.00390625
        %v489 = vmul.f32 %v456, 0.00390625
        %v490 = vmul.f32 %v459, 0.00390625
        %v491 = vmul.f32 %v462, 0.00390625
        %v492 = vmul.f32 %v465, 0.00390625
        %v493 = vmul.f32 %v468, 0.00390625
        %v494 = vmul.f32 %v471, 0.00390625
        %v495 = vmul.f32 %v474, 0.00390625
        %v496 = vmul.f32 %v477, 0.00390625
        %v497 = vmul.f32 %v480, 0.00390625
        %v498 = vmax.f32 %v320, %v321
        %499 = vmax.xlane.f32.xlu0 %v498
        %v500 = vpop.xlane.xlu0 %499
        %v501 = vmax.f32 %v322, %v323
        %502 = vmax.xlane.f32.xlu0 %v501
        %v503 = vpop.xlane.xlu0 %502
        %v504 = vmax.f32 %v324, %v325
        %505 = vmax.xlane.f32.xlu0 %v504
        %v506 = vpop.xlane.xlu0 %505
        %v507 = vmax.f32 %v326, %v327
        %508 = vmax.xlane.f32.xlu0 %v507
        %v509 = vpop.xlane.xlu0 %508
        %v510 = vmax.f32 %v328, %v329
        %511 = vmax.xlane.f32.xlu0 %v510
        %v512 = vpop.xlane.xlu0 %511
        %v513 = vmax.f32 %v330, %v331
        %514 = vmax.xlane.f32.xlu0 %v513
        %v515 = vpop.xlane.xlu0 %514
        %v516 = vmax.f32 %v332, %v333
        %517 = vmax.xlane.f32.xlu0 %v516
        %v518 = vpop.xlane.xlu0 %517
        %v519 = vmax.f32 %v334, %v335
        %520 = vmax.xlane.f32.xlu0 %v519
        %v521 = vpop.xlane.xlu0 %520
        %v522 = vmax.f32 %v336, %v337
        %523 = vmax.xlane.f32.xlu0 %v522
        %v524 = vpop.xlane.xlu0 %523
        %v525 = vmax.f32 %v338, %v339
        %526 = vmax.xlane.f32.xlu0 %v525
        %v527 = vpop.xlane.xlu0 %526
        %v528 = vmax.f32 %v340, %v341
        %529 = vmax.xlane.f32.xlu0 %v528
        %v530 = vpop.xlane.xlu0 %529
        %v531 = vmax.f32 %v342, %v343
        %532 = vmax.xlane.f32.xlu0 %v531
        %v533 = vpop.xlane.xlu0 %532
        %v534 = vmax.f32 %v344, %v345
        %535 = vmax.xlane.f32.xlu0 %v534
        %v536 = vpop.xlane.xlu0 %535
        %v537 = vmax.f32 %v346, %v347
        %538 = vmax.xlane.f32.xlu0 %v537
        %v539 = vpop.xlane.xlu0 %538
        %v540 = vmax.f32 %v348, %v349
        %541 = vmax.xlane.f32.xlu0 %v540
        %v542 = vpop.xlane.xlu0 %541
        %v543 = vmax.f32 %v350, %v351
        %544 = vmax.xlane.f32.xlu0 %v543
        %v545 = vpop.xlane.xlu0 %544
        %550 = vrot.lane.b32.xlu0 %v486, 2
        %v551 = vpop.permute.xlu0 %550
        %552 = vrot.lane.b32.xlu0 %v487, 2
        %v553 = vpop.permute.xlu0 %552
        %554 = vrot.lane.b32.xlu0 %v488, 2
        %v555 = vpop.permute.xlu0 %554
        %556 = vrot.lane.b32.xlu0 %v489, 2
        %v557 = vpop.permute.xlu0 %556
        %566 = vrot.lane.b32.xlu0 %v490, 4
        %v567 = vpop.permute.xlu0 %566
        %568 = vrot.lane.b32.xlu0 %v491, 4
        %v569 = vpop.permute.xlu0 %568
        %570 = vrot.lane.b32.xlu0 %v492, 4
        %v571 = vpop.permute.xlu0 %570
        %572 = vrot.lane.b32.xlu0 %v493, 4
        %v573 = vpop.permute.xlu0 %572
        %582 = vrot.lane.b32.xlu0 %v494, 6
        %v583 = vpop.permute.xlu0 %582
        %584 = vrot.lane.b32.xlu0 %v495, 6
        %v585 = vpop.permute.xlu0 %584
        %586 = vrot.lane.b32.xlu0 %v496, 6
        %v587 = vpop.permute.xlu0 %586
        %588 = vrot.lane.b32.xlu0 %v497, 6
        %v589 = vpop.permute.xlu0 %588
        %vm594 = vcmask 7168
        %v595 = vsel %vm594, %v482, %v500
        %v596 = vsel %vm594, %v483, %v503
        %v597 = vsel %vm594, %v484, %v506
        %v598 = vsel %vm594, %v485, %v509
        %vm599 = vcmask 15360
        %v600 = vsel %vm599, %v595, %v551
        %v601 = vsel %vm599, %v596, %v553
        %v602 = vsel %vm599, %v597, %v555
        %v603 = vsel %vm599, %v598, %v557
        %vm604 = vcmask 23552
        %v605 = vsel %vm604, %v600, %v512
        %v606 = vsel %vm604, %v601, %v515
        %v607 = vsel %vm604, %v602, %v518
        %v608 = vsel %vm604, %v603, %v521
        %vm609 = vcmask 31744
        %v610 = vsel %vm609, %v605, %v567
        %v611 = vsel %vm609, %v606, %v569
        %v612 = vsel %vm609, %v607, %v571
        %v613 = vsel %vm609, %v608, %v573
        %vm614 = vcmask 39936
        %v615 = vsel %vm614, %v610, %v524
        %v616 = vsel %vm614, %v611, %v527
        %v617 = vsel %vm614, %v612, %v530
        %v618 = vsel %vm614, %v613, %v533
        %vm619 = vcmask 48128
        %v620 = vsel %vm619, %v615, %v583
        %v621 = vsel %vm619, %v616, %v585
        %v622 = vsel %vm619, %v617, %v587
        %v623 = vsel %vm619, %v618, %v589
        %vm624 = vcmask 56320
        %v625 = vsel %vm624, %v620, %v536
        %v626 = vsel %vm624, %v621, %v539
        %v627 = vsel %vm624, %v622, %v542
        %v628 = vsel %vm624, %v623, %v545
        %v629 = vld [vmem:[%s1] sm:$0x3]
        %v630 = vld [vmem:[%s2] sm:$0x3]
        %632 = vset.pattern.permute.xlu0 0
        %633 = vperm.xlu0 %632, %v630
        %v634 = vpop.permute.xlu0 %633
        %vm636 = vcmask 261120
        %v638 = vsel %vm636, %v629, 0
        %640 = vmatpush.msra.mxu0 0.0
        %641 = vmatpush.msra.mxu0 0.0
        %642 = vmatpush.msra.mxu0 0.0
        %643 = vmatpush.msra.mxu0 0.0
        %644 = vmatpush.msra.mxu0 0.0
        %645 = vmatpush.msra.mxu0 0.0
        %646 = vmatpush.msra.mxu0 0.0
        %647 = vmatpush.msra.mxu0 0.0
        %648 = vmatpush.msra.mxu0 0.0
        %649 = vmatpush.msra.mxu0 0.0
        %650 = vmatpush.msra.mxu0 0.0
        %651 = vmatpush.msra.mxu0 0.0
        %652 = vmatpush.msra.mxu0 %v628
        %653 = vmatpush.msra.mxu0 %v627
        %654 = vmatpush.msra.mxu0 %v626
        %655 = vmatpush.msra.mxu0 %v625
        %656 = vmatmul.f32.gmra.mxu0 %v638
        %v657 = vpop.f32.mrf.mxu0
        %v658 = vadd.f32 %v634, %v657
        %659 = vdwg.mxu0
        %v660 = vmax.f32 %v658, 0.0
        %v661 = vld [vmem:[%s3] sm:$0xff]
        %v662 = vld [vmem:[%s3 + $0x8] sm:$0xff]
        %v663 = vld [vmem:[%s3 + $0x10] sm:$0xff]
        %v664 = vld [vmem:[%s3 + $0x18] sm:$0xff]
        %v665 = vld [vmem:[%s4] sm:$0xff]
        %v666 = vld [vmem:[%s4 + $0x8] sm:$0xff]
        %v667 = vld [vmem:[%s4 + $0x10] sm:$0xff]
        %v668 = vld [vmem:[%s4 + $0x18] sm:$0xff]
        %670 = vset.pattern.permute.xlu0 0
        %671 = vperm.xlu0 %670, %v665
        %v672 = vpop.permute.xlu0 %671
        %675 = vset.pattern.permute.xlu0 0
        %676 = vperm.xlu0 %675, %v666
        %v677 = vpop.permute.xlu0 %676
        %680 = vset.pattern.permute.xlu0 0
        %681 = vperm.xlu0 %680, %v667
        %v682 = vpop.permute.xlu0 %681
        %685 = vset.pattern.permute.xlu0 0
        %686 = vperm.xlu0 %685, %v668
        %v687 = vpop.permute.xlu0 %686
        %v690 = vsel %vm599, %v661, 0
        %v693 = vsel %vm599, %v662, 0
        %v696 = vsel %vm599, %v663, 0
        %v699 = vsel %vm599, %v664, 0
        %vm701 = vcmask 1041408
        %v703 = vsel %vm701, %v660, 0
        %705 = vmatpush.msra.mxu0 0.0
        %706 = vmatpush.msra.mxu0 0.0
        %707 = vmatpush.msra.mxu0 0.0
        %708 = vmatpush.msra.mxu0 0.0
        %709 = vmatpush.msra.mxu0 0.0
        %710 = vmatpush.msra.mxu0 0.0
        %711 = vmatpush.msra.mxu0 0.0
        %712 = vmatpush.msra.mxu0 0.0
        %713 = vmatpush.msra.mxu0 0.0
        %714 = vmatpush.msra.mxu0 0.0
        %715 = vmatpush.msra.mxu0 0.0
        %716 = vmatpush.msra.mxu0 0.0
        %717 = vmatpush.msra.mxu0 0.0
        %718 = vmatpush.msra.mxu0 0.0
        %719 = vmatpush.msra.mxu0 0.0
        %720 = vmatpush.msra.mxu0 %v703
        %721 = vmatmul.f32.gmra.mxu0 %v690
        %v722 = vpop.f32.mrf.mxu0
        %v723 = vadd.f32 %v672, %v722
        %724 = vmatmul.f32.gmra.mxu0 %v693
        %v725 = vpop.f32.mrf.mxu0
        %v726 = vadd.f32 %v677, %v725
        %727 = vmatmul.f32.gmra.mxu0 %v696
        %v728 = vpop.f32.mrf.mxu0
        %v729 = vadd.f32 %v682, %v728
        %730 = vmatmul.f32.gmra.mxu0 %v699
        %v731 = vpop.f32.mrf.mxu0
        %v732 = vadd.f32 %v687, %v731
        %733 = vdwg.mxu0
        %738 = vrot.lane.b32.xlu0 %v723, 127
        %v739 = vpop.permute.xlu0 %738
        %740 = vrot.lane.b32.xlu0 %v726, 127
        %v741 = vpop.permute.xlu0 %740
        %742 = vrot.lane.b32.xlu0 %v729, 127
        %v743 = vpop.permute.xlu0 %742
        %744 = vrot.lane.b32.xlu0 %v732, 127
        %v745 = vpop.permute.xlu0 %744
        %v750 = vadd.f32 %v723, %v739
        %v751 = vadd.f32 %v726, %v741
        %v752 = vadd.f32 %v729, %v743
        %v753 = vadd.f32 %v732, %v745
        %v754 = vxor.u32 %v750, 2147483648
        %v755 = vxor.u32 %v751, 2147483648
        %v756 = vxor.u32 %v752, 2147483648
        %v757 = vxor.u32 %v753, 2147483648
        %v758 = vmul.f32 %v754, 1.442695
        %v759 = vpow.pop %v758
        %v760 = vmul.f32 %v755, 1.442695
        %v761 = vpow.pop %v760
        %v762 = vmul.f32 %v756, 1.442695
        %v763 = vpow.pop %v762
        %v764 = vmul.f32 %v757, 1.442695
        %v765 = vpow.pop %v764
        %v766 = vadd.f32 %v759, 1.0
        %v767 = vadd.f32 %v761, 1.0
        %v768 = vadd.f32 %v763, 1.0
        %v769 = vadd.f32 %v765, 1.0
        %v770 = vrcp.pop %v766
        %v771 = vmul.f32 %v766, %v770
        %v772 = vsub.f32 1.0, %v771
        %v773 = vmul.f32 %v770, %v772
        %v774 = vadd.f32 %v770, %v773
        %vm775 = vweird.f32 %v766
        %vm776 = vweird.f32 %v770
        %vm777 = vmor %vm775, %vm776
        %v778 = vsel %vm777, %v770, %v774
        %v779 = vand.u32 2147483647, %v766
        %vm780 = vcmp.eq.f32.partialorder %v779, 8.507059e+37
        %v781 = vand.u32 %v766, 2147483648
        %v782 = vor.u32 1.1754944e-38, %v781
        %v783 = vsel %vm780, %v782, %v778
        %v784 = vmul.f32 1.0, %v783
        %v785 = vrcp.pop %v767
        %v786 = vmul.f32 %v767, %v785
        %v787 = vsub.f32 1.0, %v786
        %v788 = vmul.f32 %v785, %v787
        %v789 = vadd.f32 %v785, %v788
        %vm790 = vweird.f32 %v767
        %vm791 = vweird.f32 %v785
        %vm792 = vmor %vm790, %vm791
        %v793 = vsel %vm792, %v785, %v789
        %v794 = vand.u32 2147483647, %v767
        %vm795 = vcmp.eq.f32.partialorder %v794, 8.507059e+37
        %v796 = vand.u32 %v767, 2147483648
        %v797 = vor.u32 1.1754944e-38, %v796
        %v798 = vsel %vm795, %v797, %v793
        %v799 = vmul.f32 1.0, %v798
        %v800 = vrcp.pop %v768
        %v801 = vmul.f32 %v768, %v800
        %v802 = vsub.f32 1.0, %v801
        %v803 = vmul.f32 %v800, %v802
        %v804 = vadd.f32 %v800, %v803
        %vm805 = vweird.f32 %v768
        %vm806 = vweird.f32 %v800
        %vm807 = vmor %vm805, %vm806
        %v808 = vsel %vm807, %v800, %v804
        %v809 = vand.u32 2147483647, %v768
        %vm810 = vcmp.eq.f32.partialorder %v809, 8.507059e+37
        %v811 = vand.u32 %v768, 2147483648
        %v812 = vor.u32 1.1754944e-38, %v811
        %v813 = vsel %vm810, %v812, %v808
        %v814 = vmul.f32 1.0, %v813
        %v815 = vrcp.pop %v769
        %v816 = vmul.f32 %v769, %v815
        %v817 = vsub.f32 1.0, %v816
        %v818 = vmul.f32 %v815, %v817
        %v819 = vadd.f32 %v815, %v818
        %vm820 = vweird.f32 %v769
        %vm821 = vweird.f32 %v815
        %vm822 = vmor %vm820, %vm821
        %v823 = vsel %vm822, %v815, %v819
        %v824 = vand.u32 2147483647, %v769
        %vm825 = vcmp.eq.f32.partialorder %v824, 8.507059e+37
        %v826 = vand.u32 %v769, 2147483648
        %v827 = vor.u32 1.1754944e-38, %v826
        %v828 = vsel %vm825, %v827, %v823
        %v829 = vmul.f32 1.0, %v828
        %831 = vset.pattern.permute.xlu0 0
        %832 = vperm.xlu0 %831, %v784
        %v833 = vpop.permute.xlu0 %832
        %836 = vset.pattern.permute.xlu0 0
        %837 = vperm.xlu0 %836, %v799
        %v838 = vpop.permute.xlu0 %837
        %841 = vset.pattern.permute.xlu0 0
        %842 = vperm.xlu0 %841, %v814
        %v843 = vpop.permute.xlu0 %842
        %846 = vset.pattern.permute.xlu0 0
        %847 = vperm.xlu0 %846, %v829
        %v848 = vpop.permute.xlu0 %847
        %v850 = vmul.f32 %v320, %v833
        %v851 = vmul.f32 %v321, %v833
        %v852 = vmul.f32 %v322, %v838
        %v853 = vmul.f32 %v323, %v838
        %v854 = vmul.f32 %v324, %v843
        %v855 = vmul.f32 %v325, %v843
        %v856 = vmul.f32 %v326, %v848
        %v857 = vmul.f32 %v327, %v848
        %v858 = vmax.f32 %v850, %v854
        %v859 = vmax.f32 %v852, %v856
        %v860 = vmax.f32 %v858, %v859
        %v861 = vrot.slane %v860, 4
        %v862 = vmax.f32 %v860, %v861
        %v863 = vrot.slane %v862, 2
        %v864 = vmax.f32 %v862, %v863
        %v865 = vrot.slane %v864, 1
        %v866 = vmax.f32 %v864, %v865
        %v867 = vmax.f32 %v851, %v855
        %v868 = vmax.f32 %v853, %v857
        %v869 = vmax.f32 %v867, %v868
        %v870 = vrot.slane %v869, 4
        %v871 = vmax.f32 %v869, %v870
        %v872 = vrot.slane %v871, 2
        %v873 = vmax.f32 %v871, %v872
        %v874 = vrot.slane %v873, 1
        %v875 = vmax.f32 %v873, %v874
        %v877 = vsel %vm636, 0.03125, 0
        %879 = vmatpush.msra.mxu0 0.0
        %880 = vmatpush.msra.mxu0 0.0
        %881 = vmatpush.msra.mxu0 0.0
        %882 = vmatpush.msra.mxu0 0.0
        %883 = vmatpush.msra.mxu0 0.0
        %884 = vmatpush.msra.mxu0 0.0
        %885 = vmatpush.msra.mxu0 0.0
        %886 = vmatpush.msra.mxu0 0.0
        %887 = vmatpush.msra.mxu0 0.0
        %888 = vmatpush.msra.mxu0 0.0
        %889 = vmatpush.msra.mxu0 0.0
        %890 = vmatpush.msra.mxu0 0.0
        %891 = vmatpush.msra.mxu0 %v856
        %892 = vmatpush.msra.mxu0 %v854
        %893 = vmatpush.msra.mxu0 %v852
        %894 = vmatpush.msra.mxu0 %v850
        %895 = vmatmul.f32.gmra.mxu0 %v877
        %v896 = vpop.f32.mrf.mxu0
        %v897 = vadd.f32 0.0, %v896
        %898 = vdwg.mxu0
        %899 = vmatpush.msra.mxu0 0.0
        %900 = vmatpush.msra.mxu0 0.0
        %901 = vmatpush.msra.mxu0 0.0
        %902 = vmatpush.msra.mxu0 0.0
        %903 = vmatpush.msra.mxu0 0.0
        %904 = vmatpush.msra.mxu0 0.0
        %905 = vmatpush.msra.mxu0 0.0
        %906 = vmatpush.msra.mxu0 0.0
        %907 = vmatpush.msra.mxu0 0.0
        %908 = vmatpush.msra.mxu0 0.0
        %909 = vmatpush.msra.mxu0 0.0
        %910 = vmatpush.msra.mxu0 0.0
        %911 = vmatpush.msra.mxu0 %v857
        %912 = vmatpush.msra.mxu0 %v855
        %913 = vmatpush.msra.mxu0 %v853
        %914 = vmatpush.msra.mxu0 %v851
        %915 = vmatmul.f32.gmra.mxu0 %v877
        %v916 = vpop.f32.mrf.mxu0
        %v917 = vadd.f32 0.0, %v916
        %918 = vdwg.mxu0
        %919 = vset.pattern.permute.xlu0 2
        %920 = vperm.xlu0 %919, %v784
        %v921 = vpop.permute.xlu0 %920
        %923 = vset.pattern.permute.xlu0 2
        %924 = vperm.xlu0 %923, %v799
        %v925 = vpop.permute.xlu0 %924
        %927 = vset.pattern.permute.xlu0 2
        %928 = vperm.xlu0 %927, %v814
        %v929 = vpop.permute.xlu0 %928
        %931 = vset.pattern.permute.xlu0 2
        %932 = vperm.xlu0 %931, %v829
        %v933 = vpop.permute.xlu0 %932
        %v935 = vmul.f32 %v328, %v921
        %v936 = vmul.f32 %v329, %v921
        %v937 = vmul.f32 %v330, %v925
        %v938 = vmul.f32 %v331, %v925
        %v939 = vmul.f32 %v332, %v929
        %v940 = vmul.f32 %v333, %v929
        %v941 = vmul.f32 %v334, %v933
        %v942 = vmul.f32 %v335, %v933
        %v943 = vmax.f32 %v935, %v939
        %v944 = vmax.f32 %v937, %v941
        %v945 = vmax.f32 %v943, %v944
        %v946 = vrot.slane %v945, 4
        %v947 = vmax.f32 %v945, %v946
        %v948 = vrot.slane %v947, 2
        %v949 = vmax.f32 %v947, %v948
        %v950 = vrot.slane %v949, 1
        %v951 = vmax.f32 %v949, %v950
        %v952 = vmax.f32 %v936, %v940
        %v953 = vmax.f32 %v938, %v942
        %v954 = vmax.f32 %v952, %v953
        %v955 = vrot.slane %v954, 4
        %v956 = vmax.f32 %v954, %v955
        %v957 = vrot.slane %v956, 2
        %v958 = vmax.f32 %v956, %v957
        %v959 = vrot.slane %v958, 1
        %v960 = vmax.f32 %v958, %v959
        %961 = vmatpush.msra.mxu0 0.0
        %962 = vmatpush.msra.mxu0 0.0
        %963 = vmatpush.msra.mxu0 0.0
        %964 = vmatpush.msra.mxu0 0.0
        %965 = vmatpush.msra.mxu0 0.0
        %966 = vmatpush.msra.mxu0 0.0
        %967 = vmatpush.msra.mxu0 0.0
        %968 = vmatpush.msra.mxu0 0.0
        %969 = vmatpush.msra.mxu0 0.0
        %970 = vmatpush.msra.mxu0 0.0
        %971 = vmatpush.msra.mxu0 0.0
        %972 = vmatpush.msra.mxu0 0.0
        %973 = vmatpush.msra.mxu0 %v941
        %974 = vmatpush.msra.mxu0 %v939
        %975 = vmatpush.msra.mxu0 %v937
        %976 = vmatpush.msra.mxu0 %v935
        %977 = vmatmul.f32.gmra.mxu0 %v877
        %v978 = vpop.f32.mrf.mxu0
        %v979 = vadd.f32 0.0, %v978
        %980 = vdwg.mxu0
        %981 = vmatpush.msra.mxu0 0.0
        %982 = vmatpush.msra.mxu0 0.0
        %983 = vmatpush.msra.mxu0 0.0
        %984 = vmatpush.msra.mxu0 0.0
        %985 = vmatpush.msra.mxu0 0.0
        %986 = vmatpush.msra.mxu0 0.0
        %987 = vmatpush.msra.mxu0 0.0
        %988 = vmatpush.msra.mxu0 0.0
        %989 = vmatpush.msra.mxu0 0.0
        %990 = vmatpush.msra.mxu0 0.0
        %991 = vmatpush.msra.mxu0 0.0
        %992 = vmatpush.msra.mxu0 0.0
        %993 = vmatpush.msra.mxu0 %v942
        %994 = vmatpush.msra.mxu0 %v940
        %995 = vmatpush.msra.mxu0 %v938
        %996 = vmatpush.msra.mxu0 %v936
        %997 = vmatmul.f32.gmra.mxu0 %v877
        %v998 = vpop.f32.mrf.mxu0
        %v999 = vadd.f32 0.0, %v998
        %1000 = vdwg.mxu0
        %1001 = vset.pattern.permute.xlu0 4
        %1002 = vperm.xlu0 %1001, %v784
        %v1003 = vpop.permute.xlu0 %1002
        %1005 = vset.pattern.permute.xlu0 4
        %1006 = vperm.xlu0 %1005, %v799
        %v1007 = vpop.permute.xlu0 %1006
        %1009 = vset.pattern.permute.xlu0 4
        %1010 = vperm.xlu0 %1009, %v814
        %v1011 = vpop.permute.xlu0 %1010
        %1013 = vset.pattern.permute.xlu0 4
        %1014 = vperm.xlu0 %1013, %v829
        %v1015 = vpop.permute.xlu0 %1014
        %v1017 = vmul.f32 %v336, %v1003
        %v1018 = vmul.f32 %v337, %v1003
        %v1019 = vmul.f32 %v338, %v1007
        %v1020 = vmul.f32 %v339, %v1007
        %v1021 = vmul.f32 %v340, %v1011
        %v1022 = vmul.f32 %v341, %v1011
        %v1023 = vmul.f32 %v342, %v1015
        %v1024 = vmul.f32 %v343, %v1015
        %v1025 = vmax.f32 %v1017, %v1021
        %v1026 = vmax.f32 %v1019, %v1023
        %v1027 = vmax.f32 %v1025, %v1026
        %v1028 = vrot.slane %v1027, 4
        %v1029 = vmax.f32 %v1027, %v1028
        %v1030 = vrot.slane %v1029, 2
        %v1031 = vmax.f32 %v1029, %v1030
        %v1032 = vrot.slane %v1031, 1
        %v1033 = vmax.f32 %v1031, %v1032
        %v1034 = vmax.f32 %v1018, %v1022
        %v1035 = vmax.f32 %v1020, %v1024
        %v1036 = vmax.f32 %v1034, %v1035
        %v1037 = vrot.slane %v1036, 4
        %v1038 = vmax.f32 %v1036, %v1037
        %v1039 = vrot.slane %v1038, 2
        %v1040 = vmax.f32 %v1038, %v1039
        %v1041 = vrot.slane %v1040, 1
        %v1042 = vmax.f32 %v1040, %v1041
        %1043 = vmatpush.msra.mxu0 0.0
        %1044 = vmatpush.msra.mxu0 0.0
        %1045 = vmatpush.msra.mxu0 0.0
        %1046 = vmatpush.msra.mxu0 0.0
        %1047 = vmatpush.msra.mxu0 0.0
        %1048 = vmatpush.msra.mxu0 0.0
        %1049 = vmatpush.msra.mxu0 0.0
        %1050 = vmatpush.msra.mxu0 0.0
        %1051 = vmatpush.msra.mxu0 0.0
        %1052 = vmatpush.msra.mxu0 0.0
        %1053 = vmatpush.msra.mxu0 0.0
        %1054 = vmatpush.msra.mxu0 0.0
        %1055 = vmatpush.msra.mxu0 %v1023
        %1056 = vmatpush.msra.mxu0 %v1021
        %1057 = vmatpush.msra.mxu0 %v1019
        %1058 = vmatpush.msra.mxu0 %v1017
        %1059 = vmatmul.f32.gmra.mxu0 %v877
        %v1060 = vpop.f32.mrf.mxu0
        %v1061 = vadd.f32 0.0, %v1060
        %1062 = vdwg.mxu0
        %1063 = vmatpush.msra.mxu0 0.0
        %1064 = vmatpush.msra.mxu0 0.0
        %1065 = vmatpush.msra.mxu0 0.0
        %1066 = vmatpush.msra.mxu0 0.0
        %1067 = vmatpush.msra.mxu0 0.0
        %1068 = vmatpush.msra.mxu0 0.0
        %1069 = vmatpush.msra.mxu0 0.0
        %1070 = vmatpush.msra.mxu0 0.0
        %1071 = vmatpush.msra.mxu0 0.0
        %1072 = vmatpush.msra.mxu0 0.0
        %1073 = vmatpush.msra.mxu0 0.0
        %1074 = vmatpush.msra.mxu0 0.0
        %1075 = vmatpush.msra.mxu0 %v1024
        %1076 = vmatpush.msra.mxu0 %v1022
        %1077 = vmatpush.msra.mxu0 %v1020
        %1078 = vmatpush.msra.mxu0 %v1018
        %1079 = vmatmul.f32.gmra.mxu0 %v877
        %v1080 = vpop.f32.mrf.mxu0
        %v1081 = vadd.f32 0.0, %v1080
        %1082 = vdwg.mxu0
        %1083 = vset.pattern.permute.xlu0 6
        %1084 = vperm.xlu0 %1083, %v784
        %v1085 = vpop.permute.xlu0 %1084
        %1087 = vset.pattern.permute.xlu0 6
        %1088 = vperm.xlu0 %1087, %v799
        %v1089 = vpop.permute.xlu0 %1088
        %1091 = vset.pattern.permute.xlu0 6
        %1092 = vperm.xlu0 %1091, %v814
        %v1093 = vpop.permute.xlu0 %1092
        %1095 = vset.pattern.permute.xlu0 6
        %1096 = vperm.xlu0 %1095, %v829
        %v1097 = vpop.permute.xlu0 %1096
        %v1099 = vmul.f32 %v344, %v1085
        %v1100 = vmul.f32 %v345, %v1085
        %v1101 = vmul.f32 %v346, %v1089
        %v1102 = vmul.f32 %v347, %v1089
        %v1103 = vmul.f32 %v348, %v1093
        %v1104 = vmul.f32 %v349, %v1093
        %v1105 = vmul.f32 %v350, %v1097
        %v1106 = vmul.f32 %v351, %v1097
        %v1107 = vmax.f32 %v1099, %v1103
        %v1108 = vmax.f32 %v1101, %v1105
        %v1109 = vmax.f32 %v1107, %v1108
        %v1110 = vrot.slane %v1109, 4
        %v1111 = vmax.f32 %v1109, %v1110
        %v1112 = vrot.slane %v1111, 2
        %v1113 = vmax.f32 %v1111, %v1112
        %v1114 = vrot.slane %v1113, 1
        %v1115 = vmax.f32 %v1113, %v1114
        %v1116 = vmax.f32 %v1100, %v1104
        %v1117 = vmax.f32 %v1102, %v1106
        %v1118 = vmax.f32 %v1116, %v1117
        %v1119 = vrot.slane %v1118, 4
        %v1120 = vmax.f32 %v1118, %v1119
        %v1121 = vrot.slane %v1120, 2
        %v1122 = vmax.f32 %v1120, %v1121
        %v1123 = vrot.slane %v1122, 1
        %v1124 = vmax.f32 %v1122, %v1123
        %1125 = vmatpush.msra.mxu0 0.0
        %1126 = vmatpush.msra.mxu0 0.0
        %1127 = vmatpush.msra.mxu0 0.0
        %1128 = vmatpush.msra.mxu0 0.0
        %1129 = vmatpush.msra.mxu0 0.0
        %1130 = vmatpush.msra.mxu0 0.0
        %1131 = vmatpush.msra.mxu0 0.0
        %1132 = vmatpush.msra.mxu0 0.0
        %1133 = vmatpush.msra.mxu0 0.0
        %1134 = vmatpush.msra.mxu0 0.0
        %1135 = vmatpush.msra.mxu0 0.0
        %1136 = vmatpush.msra.mxu0 0.0
        %1137 = vmatpush.msra.mxu0 %v1105
        %1138 = vmatpush.msra.mxu0 %v1103
        %1139 = vmatpush.msra.mxu0 %v1101
        %1140 = vmatpush.msra.mxu0 %v1099
        %1141 = vmatmul.f32.gmra.mxu0 %v877
        %v1142 = vpop.f32.mrf.mxu0
        %v1143 = vadd.f32 0.0, %v1142
        %1144 = vdwg.mxu0
        %1145 = vmatpush.msra.mxu0 0.0
        %1146 = vmatpush.msra.mxu0 0.0
        %1147 = vmatpush.msra.mxu0 0.0
        %1148 = vmatpush.msra.mxu0 0.0
        %1149 = vmatpush.msra.mxu0 0.0
        %1150 = vmatpush.msra.mxu0 0.0
        %1151 = vmatpush.msra.mxu0 0.0
        %1152 = vmatpush.msra.mxu0 0.0
        %1153 = vmatpush.msra.mxu0 0.0
        %1154 = vmatpush.msra.mxu0 0.0
        %1155 = vmatpush.msra.mxu0 0.0
        %1156 = vmatpush.msra.mxu0 0.0
        %1157 = vmatpush.msra.mxu0 %v1106
        %1158 = vmatpush.msra.mxu0 %v1104
        %1159 = vmatpush.msra.mxu0 %v1102
        %1160 = vmatpush.msra.mxu0 %v1100
        %1161 = vmatmul.f32.gmra.mxu0 %v877
        %v1162 = vpop.f32.mrf.mxu0
        %v1163 = vadd.f32 0.0, %v1162
        %1164 = vdwg.mxu0
        %v1167 = vrot.slane %v897, 4
        %v1168 = vrot.slane %v917, 4
        %v1173 = vrot.slane %v979, 3
        %v1174 = vrot.slane %v999, 3
        %v1179 = vrot.slane %v1061, 2
        %v1180 = vrot.slane %v1081, 2
        %v1185 = vrot.slane %v1143, 1
        %v1186 = vrot.slane %v1163, 1
        %vm1189 = vcmask 1040384
        %v1190 = vsel %vm1189, %v866, %v951
        %v1191 = vsel %vm1189, %v875, %v960
        %v1192 = vsel %vm701, %v1190, %v1033
        %v1193 = vsel %vm701, %v1191, %v1042
        %vm1194 = vcmask 1042432
        %v1195 = vsel %vm1194, %v1192, %v1115
        %v1196 = vsel %vm1194, %v1193, %v1124
        %vm1197 = vcmask 1043456
        %v1198 = vsel %vm1197, %v1195, %v1167
        %v1199 = vsel %vm1197, %v1196, %v1168
        %vm1200 = vcmask 1044480
        %v1201 = vsel %vm1200, %v1198, %v1173
        %v1202 = vsel %vm1200, %v1199, %v1174
        %vm1203 = vcmask 1045504
        %v1204 = vsel %vm1203, %v1201, %v1179
        %v1205 = vsel %vm1203, %v1202, %v1180
        %vm1206 = vcmask 1046528
        %v1207 = vsel %vm1206, %v1204, %v1185
        %v1208 = vsel %vm1206, %v1205, %v1186
        %1209 = vrot.lane.b32.xlu0 %v1207, 51
        %v1210 = vpop.permute.xlu0 %1209
        %1211 = vrot.lane.b32.xlu0 %v1208, 51
        %v1212 = vpop.permute.xlu0 %1211
        %v1213 = vlaneseq
        %v1214 = vand.u32 %v1213, 127
        %vm1215 = vcmp.lt.s32.totalorder %v1214, 51
        %v1216 = vsel %vm1215, %v1210, %v1212
        %v1217 = vsel %vm1215, %v1212, %v1210
        %v1218 = vld [vmem:[#allocation6] sm:$0xff]
        %v1219 = vld [vmem:[#allocation6 + $0x8] sm:$0xff]
        %v1220 = vmul.f32 %v1217, %v1218
        %v1221 = vmul.f32 %v1216, %v1219
        %v1222 = vadd.f32 %v1220, 0.0
        %v1223 = vadd.f32 %v1221, 0.0
        %1224 = vrot.lane.b32.xlu0 %v1207, 50
        %v1225 = vpop.permute.xlu0 %1224
        %1226 = vrot.lane.b32.xlu0 %v1208, 50
        %v1227 = vpop.permute.xlu0 %1226
        %vm1228 = vcmp.lt.s32.totalorder %v1214, 50
        %v1229 = vsel %vm1228, %v1225, %v1227
        %v1230 = vsel %vm1228, %v1227, %v1225
        %s1231 = scalar_lea.vmem [#allocation6], 16
        %v1232 = vld [vmem:[%s1231] sm:$0xff]
        %v1233 = vld [vmem:[%s1231 + $0x8] sm:$0xff]
        %v1234 = vmul.f32 %v1230, %v1232
        %v1235 = vmul.f32 %v1229, %v1233
        %v1236 = vadd.f32 %v1234, 0.0
        %v1237 = vadd.f32 %v1235, 0.0
        %1238 = vrot.lane.b32.xlu0 %v1207, 49
        %v1239 = vpop.permute.xlu0 %1238
        %1240 = vrot.lane.b32.xlu0 %v1208, 49
        %v1241 = vpop.permute.xlu0 %1240
        %vm1242 = vcmp.lt.s32.totalorder %v1214, 49
        %v1243 = vsel %vm1242, %v1239, %v1241
        %v1244 = vsel %vm1242, %v1241, %v1239
        %s1245 = scalar_lea.vmem [#allocation6], 32
        %v1246 = vld [vmem:[%s1245] sm:$0xff]
        %v1247 = vld [vmem:[%s1245 + $0x8] sm:$0xff]
        %v1248 = vmul.f32 %v1244, %v1246
        %v1249 = vmul.f32 %v1243, %v1247
        %v1250 = vadd.f32 %v1222, %v1248
        %v1251 = vadd.f32 %v1223, %v1249
        %1252 = vrot.lane.b32.xlu0 %v1207, 48
        %v1253 = vpop.permute.xlu0 %1252
        %1254 = vrot.lane.b32.xlu0 %v1208, 48
        %v1255 = vpop.permute.xlu0 %1254
        %vm1256 = vcmp.lt.s32.totalorder %v1214, 48
        %v1257 = vsel %vm1256, %v1253, %v1255
        %v1258 = vsel %vm1256, %v1255, %v1253
        %s1259 = scalar_lea.vmem [#allocation6], 48
        %v1260 = vld [vmem:[%s1259] sm:$0xff]
        %v1261 = vld [vmem:[%s1259 + $0x8] sm:$0xff]
        %v1262 = vmul.f32 %v1258, %v1260
        %v1263 = vmul.f32 %v1257, %v1261
        %v1264 = vadd.f32 %v1236, %v1262
        %v1265 = vadd.f32 %v1237, %v1263
        %1266 = vrot.lane.b32.xlu0 %v1207, 47
        %v1267 = vpop.permute.xlu0 %1266
        %1268 = vrot.lane.b32.xlu0 %v1208, 47
        %v1269 = vpop.permute.xlu0 %1268
        %vm1270 = vcmp.lt.s32.totalorder %v1214, 47
        %v1271 = vsel %vm1270, %v1267, %v1269
        %v1272 = vsel %vm1270, %v1269, %v1267
        %s1273 = scalar_lea.vmem [#allocation6], 64
        %v1274 = vld [vmem:[%s1273] sm:$0xff]
        %v1275 = vld [vmem:[%s1273 + $0x8] sm:$0xff]
        %v1276 = vmul.f32 %v1272, %v1274
        %v1277 = vmul.f32 %v1271, %v1275
        %v1278 = vadd.f32 %v1250, %v1276
        %v1279 = vadd.f32 %v1251, %v1277
        %1280 = vrot.lane.b32.xlu0 %v1207, 46
        %v1281 = vpop.permute.xlu0 %1280
        %1282 = vrot.lane.b32.xlu0 %v1208, 46
        %v1283 = vpop.permute.xlu0 %1282
        %vm1284 = vcmp.lt.s32.totalorder %v1214, 46
        %v1285 = vsel %vm1284, %v1281, %v1283
        %v1286 = vsel %vm1284, %v1283, %v1281
        %s1287 = scalar_lea.vmem [#allocation6], 80
        %v1288 = vld [vmem:[%s1287] sm:$0xff]
        %v1289 = vld [vmem:[%s1287 + $0x8] sm:$0xff]
        %v1290 = vmul.f32 %v1286, %v1288
        %v1291 = vmul.f32 %v1285, %v1289
        %v1292 = vadd.f32 %v1264, %v1290
        %v1293 = vadd.f32 %v1265, %v1291
        %1294 = vrot.lane.b32.xlu0 %v1207, 45
        %v1295 = vpop.permute.xlu0 %1294
        %1296 = vrot.lane.b32.xlu0 %v1208, 45
        %v1297 = vpop.permute.xlu0 %1296
        %vm1298 = vcmp.lt.s32.totalorder %v1214, 45
        %v1299 = vsel %vm1298, %v1295, %v1297
        %v1300 = vsel %vm1298, %v1297, %v1295
        %s1301 = scalar_lea.vmem [#allocation6], 96
        %v1302 = vld [vmem:[%s1301] sm:$0xff]
        %v1303 = vld [vmem:[%s1301 + $0x8] sm:$0xff]
        %v1304 = vmul.f32 %v1300, %v1302
        %v1305 = vmul.f32 %v1299, %v1303
        %v1306 = vadd.f32 %v1278, %v1304
        %v1307 = vadd.f32 %v1279, %v1305
        %1308 = vrot.lane.b32.xlu0 %v1207, 35
        %v1309 = vpop.permute.xlu0 %1308
        %1310 = vrot.lane.b32.xlu0 %v1208, 35
        %v1311 = vpop.permute.xlu0 %1310
        %vm1312 = vcmp.lt.s32.totalorder %v1214, 35
        %v1313 = vsel %vm1312, %v1309, %v1311
        %v1314 = vsel %vm1312, %v1311, %v1309
        %s1315 = scalar_lea.vmem [#allocation6], 112
        %v1316 = vld [vmem:[%s1315] sm:$0xff]
        %v1317 = vld [vmem:[%s1315 + $0x8] sm:$0xff]
        %v1318 = vmul.f32 %v1314, %v1316
        %v1319 = vmul.f32 %v1313, %v1317
        %v1320 = vadd.f32 %v1292, %v1318
        %v1321 = vadd.f32 %v1293, %v1319
        %1322 = vrot.lane.b32.xlu0 %v1207, 34
        %v1323 = vpop.permute.xlu0 %1322
        %1324 = vrot.lane.b32.xlu0 %v1208, 34
        %v1325 = vpop.permute.xlu0 %1324
        %vm1326 = vcmp.lt.s32.totalorder %v1214, 34
        %v1327 = vsel %vm1326, %v1323, %v1325
        %v1328 = vsel %vm1326, %v1325, %v1323
        %s1329 = scalar_lea.vmem [#allocation6], 128
        %v1330 = vld [vmem:[%s1329] sm:$0xff]
        %v1331 = vld [vmem:[%s1329 + $0x8] sm:$0xff]
        %v1332 = vmul.f32 %v1328, %v1330
        %v1333 = vmul.f32 %v1327, %v1331
        %v1334 = vadd.f32 %v1306, %v1332
        %v1335 = vadd.f32 %v1307, %v1333
        %1336 = vrot.lane.b32.xlu0 %v1207, 33
        %v1337 = vpop.permute.xlu0 %1336
        %1338 = vrot.lane.b32.xlu0 %v1208, 33
        %v1339 = vpop.permute.xlu0 %1338
        %vm1340 = vcmp.lt.s32.totalorder %v1214, 33
        %v1341 = vsel %vm1340, %v1337, %v1339
        %v1342 = vsel %vm1340, %v1339, %v1337
        %s1343 = scalar_lea.vmem [#allocation6], 144
        %v1344 = vld [vmem:[%s1343] sm:$0xff]
        %v1345 = vld [vmem:[%s1343 + $0x8] sm:$0xff]
        %v1346 = vmul.f32 %v1342, %v1344
        %v1347 = vmul.f32 %v1341, %v1345
        %v1348 = vadd.f32 %v1320, %v1346
        %v1349 = vadd.f32 %v1321, %v1347
        %1350 = vrot.lane.b32.xlu0 %v1207, 32
        %v1351 = vpop.permute.xlu0 %1350
        %1352 = vrot.lane.b32.xlu0 %v1208, 32
        %v1353 = vpop.permute.xlu0 %1352
        %vm1354 = vcmp.lt.s32.totalorder %v1214, 32
        %v1355 = vsel %vm1354, %v1351, %v1353
        %v1356 = vsel %vm1354, %v1353, %v1351
        %s1357 = scalar_lea.vmem [#allocation6], 160
        %v1358 = vld [vmem:[%s1357] sm:$0xff]
        %v1359 = vld [vmem:[%s1357 + $0x8] sm:$0xff]
        %v1360 = vmul.f32 %v1356, %v1358
        %v1361 = vmul.f32 %v1355, %v1359
        %v1362 = vadd.f32 %v1334, %v1360
        %v1363 = vadd.f32 %v1335, %v1361
        %1364 = vrot.lane.b32.xlu0 %v1207, 31
        %v1365 = vpop.permute.xlu0 %1364
        %1366 = vrot.lane.b32.xlu0 %v1208, 31
        %v1367 = vpop.permute.xlu0 %1366
        %vm1368 = vcmp.lt.s32.totalorder %v1214, 31
        %v1369 = vsel %vm1368, %v1365, %v1367
        %v1370 = vsel %vm1368, %v1367, %v1365
        %s1371 = scalar_lea.vmem [#allocation6], 176
        %v1372 = vld [vmem:[%s1371] sm:$0xff]
        %v1373 = vld [vmem:[%s1371 + $0x8] sm:$0xff]
        %v1374 = vmul.f32 %v1370, %v1372
        %v1375 = vmul.f32 %v1369, %v1373
        %v1376 = vadd.f32 %v1348, %v1374
        %v1377 = vadd.f32 %v1349, %v1375
        %1378 = vrot.lane.b32.xlu0 %v1207, 30
        %v1379 = vpop.permute.xlu0 %1378
        %1380 = vrot.lane.b32.xlu0 %v1208, 30
        %v1381 = vpop.permute.xlu0 %1380
        %vm1382 = vcmp.lt.s32.totalorder %v1214, 30
        %v1383 = vsel %vm1382, %v1379, %v1381
        %v1384 = vsel %vm1382, %v1381, %v1379
        %s1385 = scalar_lea.vmem [#allocation6], 192
        %v1386 = vld [vmem:[%s1385] sm:$0xff]
        %v1387 = vld [vmem:[%s1385 + $0x8] sm:$0xff]
        %v1388 = vmul.f32 %v1384, %v1386
        %v1389 = vmul.f32 %v1383, %v1387
        %v1390 = vadd.f32 %v1362, %v1388
        %v1391 = vadd.f32 %v1363, %v1389
        %1392 = vrot.lane.b32.xlu0 %v1207, 29
        %v1393 = vpop.permute.xlu0 %1392
        %1394 = vrot.lane.b32.xlu0 %v1208, 29
        %v1395 = vpop.permute.xlu0 %1394
        %vm1396 = vcmp.lt.s32.totalorder %v1214, 29
        %v1397 = vsel %vm1396, %v1393, %v1395
        %v1398 = vsel %vm1396, %v1395, %v1393
        %s1399 = scalar_lea.vmem [#allocation6], 208
        %v1400 = vld [vmem:[%s1399] sm:$0xff]
        %v1401 = vld [vmem:[%s1399 + $0x8] sm:$0xff]
        %v1402 = vmul.f32 %v1398, %v1400
        %v1403 = vmul.f32 %v1397, %v1401
        %v1404 = vadd.f32 %v1376, %v1402
        %v1405 = vadd.f32 %v1377, %v1403
        %1406 = vrot.lane.b32.xlu0 %v1207, 19
        %v1407 = vpop.permute.xlu0 %1406
        %1408 = vrot.lane.b32.xlu0 %v1208, 19
        %v1409 = vpop.permute.xlu0 %1408
        %vm1410 = vcmp.lt.s32.totalorder %v1214, 19
        %v1411 = vsel %vm1410, %v1407, %v1409
        %v1412 = vsel %vm1410, %v1409, %v1407
        %s1413 = scalar_lea.vmem [#allocation6], 224
        %v1414 = vld [vmem:[%s1413] sm:$0xff]
        %v1415 = vld [vmem:[%s1413 + $0x8] sm:$0xff]
        %v1416 = vmul.f32 %v1412, %v1414
        %v1417 = vmul.f32 %v1411, %v1415
        %v1418 = vadd.f32 %v1390, %v1416
        %v1419 = vadd.f32 %v1391, %v1417
        %1420 = vrot.lane.b32.xlu0 %v1207, 18
        %v1421 = vpop.permute.xlu0 %1420
        %1422 = vrot.lane.b32.xlu0 %v1208, 18
        %v1423 = vpop.permute.xlu0 %1422
        %vm1424 = vcmp.lt.s32.totalorder %v1214, 18
        %v1425 = vsel %vm1424, %v1421, %v1423
        %v1426 = vsel %vm1424, %v1423, %v1421
        %s1427 = scalar_lea.vmem [#allocation6], 240
        %v1428 = vld [vmem:[%s1427] sm:$0xff]
        %v1429 = vld [vmem:[%s1427 + $0x8] sm:$0xff]
        %v1430 = vmul.f32 %v1426, %v1428
        %v1431 = vmul.f32 %v1425, %v1429
        %v1432 = vadd.f32 %v1404, %v1430
        %v1433 = vadd.f32 %v1405, %v1431
        %1434 = vrot.lane.b32.xlu0 %v1207, 17
        %v1435 = vpop.permute.xlu0 %1434
        %1436 = vrot.lane.b32.xlu0 %v1208, 17
        %v1437 = vpop.permute.xlu0 %1436
        %vm1438 = vcmp.lt.s32.totalorder %v1214, 17
        %v1439 = vsel %vm1438, %v1435, %v1437
        %v1440 = vsel %vm1438, %v1437, %v1435
        %s1441 = scalar_lea.vmem [#allocation6], 256
        %v1442 = vld [vmem:[%s1441] sm:$0xff]
        %v1443 = vld [vmem:[%s1441 + $0x8] sm:$0xff]
        %v1444 = vmul.f32 %v1440, %v1442
        %v1445 = vmul.f32 %v1439, %v1443
        %v1446 = vadd.f32 %v1418, %v1444
        %v1447 = vadd.f32 %v1419, %v1445
        %1448 = vrot.lane.b32.xlu0 %v1207, 16
        %v1449 = vpop.permute.xlu0 %1448
        %1450 = vrot.lane.b32.xlu0 %v1208, 16
        %v1451 = vpop.permute.xlu0 %1450
        %vm1452 = vcmp.lt.s32.totalorder %v1214, 16
        %v1453 = vsel %vm1452, %v1449, %v1451
        %v1454 = vsel %vm1452, %v1451, %v1449
        %s1455 = scalar_lea.vmem [#allocation6], 272
        %v1456 = vld [vmem:[%s1455] sm:$0xff]
        %v1457 = vld [vmem:[%s1455 + $0x8] sm:$0xff]
        %v1458 = vmul.f32 %v1454, %v1456
        %v1459 = vmul.f32 %v1453, %v1457
        %v1460 = vadd.f32 %v1432, %v1458
        %v1461 = vadd.f32 %v1433, %v1459
        %1462 = vrot.lane.b32.xlu0 %v1207, 15
        %v1463 = vpop.permute.xlu0 %1462
        %1464 = vrot.lane.b32.xlu0 %v1208, 15
        %v1465 = vpop.permute.xlu0 %1464
        %vm1466 = vcmp.lt.s32.totalorder %v1214, 15
        %v1467 = vsel %vm1466, %v1463, %v1465
        %v1468 = vsel %vm1466, %v1465, %v1463
        %s1469 = scalar_lea.vmem [#allocation6], 288
        %v1470 = vld [vmem:[%s1469] sm:$0xff]
        %v1471 = vld [vmem:[%s1469 + $0x8] sm:$0xff]
        %v1472 = vmul.f32 %v1468, %v1470
        %v1473 = vmul.f32 %v1467, %v1471
        %v1474 = vadd.f32 %v1446, %v1472
        %v1475 = vadd.f32 %v1447, %v1473
        %1476 = vrot.lane.b32.xlu0 %v1207, 14
        %v1477 = vpop.permute.xlu0 %1476
        %1478 = vrot.lane.b32.xlu0 %v1208, 14
        %v1479 = vpop.permute.xlu0 %1478
        %vm1480 = vcmp.lt.s32.totalorder %v1214, 14
        %v1481 = vsel %vm1480, %v1477, %v1479
        %v1482 = vsel %vm1480, %v1479, %v1477
        %s1483 = scalar_lea.vmem [#allocation6], 304
        %v1484 = vld [vmem:[%s1483] sm:$0xff]
        %v1485 = vld [vmem:[%s1483 + $0x8] sm:$0xff]
        %v1486 = vmul.f32 %v1482, %v1484
        %v1487 = vmul.f32 %v1481, %v1485
        %v1488 = vadd.f32 %v1460, %v1486
        %v1489 = vadd.f32 %v1461, %v1487
        %1490 = vrot.lane.b32.xlu0 %v1207, 13
        %v1491 = vpop.permute.xlu0 %1490
        %1492 = vrot.lane.b32.xlu0 %v1208, 13
        %v1493 = vpop.permute.xlu0 %1492
        %vm1494 = vcmp.lt.s32.totalorder %v1214, 13
        %v1495 = vsel %vm1494, %v1491, %v1493
        %v1496 = vsel %vm1494, %v1493, %v1491
        %s1497 = scalar_lea.vmem [#allocation6], 320
        %v1498 = vld [vmem:[%s1497] sm:$0xff]
        %v1499 = vld [vmem:[%s1497 + $0x8] sm:$0xff]
        %v1500 = vmul.f32 %v1496, %v1498
        %v1501 = vmul.f32 %v1495, %v1499
        %v1502 = vadd.f32 %v1474, %v1500
        %v1503 = vadd.f32 %v1475, %v1501
        %1504 = vrot.lane.b32.xlu0 %v1207, 3
        %v1505 = vpop.permute.xlu0 %1504
        %1506 = vrot.lane.b32.xlu0 %v1208, 3
        %v1507 = vpop.permute.xlu0 %1506
        %vm1508 = vcmp.lt.s32.totalorder %v1214, 3
        %v1509 = vsel %vm1508, %v1505, %v1507
        %v1510 = vsel %vm1508, %v1507, %v1505
        %s1511 = scalar_lea.vmem [#allocation6], 336
        %v1512 = vld [vmem:[%s1511] sm:$0xff]
        %v1513 = vld [vmem:[%s1511 + $0x8] sm:$0xff]
        %v1514 = vmul.f32 %v1510, %v1512
        %v1515 = vmul.f32 %v1509, %v1513
        %v1516 = vadd.f32 %v1488, %v1514
        %v1517 = vadd.f32 %v1489, %v1515
        %1518 = vrot.lane.b32.xlu0 %v1207, 2
        %v1519 = vpop.permute.xlu0 %1518
        %1520 = vrot.lane.b32.xlu0 %v1208, 2
        %v1521 = vpop.permute.xlu0 %1520
        %vm1522 = vcmp.lt.s32.totalorder %v1214, 2
        %v1523 = vsel %vm1522, %v1519, %v1521
        %v1524 = vsel %vm1522, %v1521, %v1519
        %s1525 = scalar_lea.vmem [#allocation6], 352
        %v1526 = vld [vmem:[%s1525] sm:$0xff]
        %v1527 = vld [vmem:[%s1525 + $0x8] sm:$0xff]
        %v1528 = vmul.f32 %v1524, %v1526
        %v1529 = vmul.f32 %v1523, %v1527
        %v1530 = vadd.f32 %v1502, %v1528
        %v1531 = vadd.f32 %v1503, %v1529
        %1532 = vrot.lane.b32.xlu0 %v1207, 1
        %v1533 = vpop.permute.xlu0 %1532
        %1534 = vrot.lane.b32.xlu0 %v1208, 1
        %v1535 = vpop.permute.xlu0 %1534
        %vm1536 = vcmp.lt.s32.totalorder %v1214, 1
        %v1537 = vsel %vm1536, %v1533, %v1535
        %v1538 = vsel %vm1536, %v1535, %v1533
        %s1539 = scalar_lea.vmem [#allocation6], 368
        %v1540 = vld [vmem:[%s1539] sm:$0xff]
        %v1541 = vld [vmem:[%s1539 + $0x8] sm:$0xff]
        %v1542 = vmul.f32 %v1538, %v1540
        %v1543 = vmul.f32 %v1537, %v1541
        %v1544 = vadd.f32 %v1516, %v1542
        %v1545 = vadd.f32 %v1517, %v1543
        %s1546 = scalar_lea.vmem [#allocation6], 384
        %v1547 = vld [vmem:[%s1546] sm:$0xff]
        %v1548 = vld [vmem:[%s1546 + $0x8] sm:$0xff]
        %v1549 = vmul.f32 %v1207, %v1547
        %v1550 = vmul.f32 %v1208, %v1548
        %v1551 = vadd.f32 %v1530, %v1549
        %v1552 = vadd.f32 %v1531, %v1550
        %1553 = vrot.lane.b32.xlu0 %v1207, 127
        %v1554 = vpop.permute.xlu0 %1553
        %1555 = vrot.lane.b32.xlu0 %v1208, 127
        %v1556 = vpop.permute.xlu0 %1555
        %vm1557 = vcmp.lt.s32.totalorder %v1214, 127
        %v1558 = vsel %vm1557, %v1554, %v1556
        %v1559 = vsel %vm1557, %v1556, %v1554
        %s1560 = scalar_lea.vmem [#allocation6], 400
        %v1561 = vld [vmem:[%s1560] sm:$0xff]
        %v1562 = vld [vmem:[%s1560 + $0x8] sm:$0xff]
        %v1563 = vmul.f32 %v1558, %v1561
        %v1564 = vmul.f32 %v1559, %v1562
        %v1565 = vadd.f32 %v1544, %v1563
        %v1566 = vadd.f32 %v1545, %v1564
        %1567 = vrot.lane.b32.xlu0 %v1207, 126
        %v1568 = vpop.permute.xlu0 %1567
        %1569 = vrot.lane.b32.xlu0 %v1208, 126
        %v1570 = vpop.permute.xlu0 %1569
        %vm1571 = vcmp.lt.s32.totalorder %v1214, 126
        %v1572 = vsel %vm1571, %v1568, %v1570
        %v1573 = vsel %vm1571, %v1570, %v1568
        %s1574 = scalar_lea.vmem [#allocation6], 416
        %v1575 = vld [vmem:[%s1574] sm:$0xff]
        %v1576 = vld [vmem:[%s1574 + $0x8] sm:$0xff]
        %v1577 = vmul.f32 %v1572, %v1575
        %v1578 = vmul.f32 %v1573, %v1576
        %v1579 = vadd.f32 %v1551, %v1577
        %v1580 = vadd.f32 %v1552, %v1578
        %1581 = vrot.lane.b32.xlu0 %v1207, 125
        %v1582 = vpop.permute.xlu0 %1581
        %1583 = vrot.lane.b32.xlu0 %v1208, 125
        %v1584 = vpop.permute.xlu0 %1583
        %vm1585 = vcmp.lt.s32.totalorder %v1214, 125
        %v1586 = vsel %vm1585, %v1582, %v1584
        %v1587 = vsel %vm1585, %v1584, %v1582
        %s1588 = scalar_lea.vmem [#allocation6], 432
        %v1589 = vld [vmem:[%s1588] sm:$0xff]
        %v1590 = vld [vmem:[%s1588 + $0x8] sm:$0xff]
        %v1591 = vmul.f32 %v1586, %v1589
        %v1592 = vmul.f32 %v1587, %v1590
        %v1593 = vadd.f32 %v1565, %v1591
        %v1594 = vadd.f32 %v1566, %v1592
        %1595 = vrot.lane.b32.xlu0 %v1207, 115
        %v1596 = vpop.permute.xlu0 %1595
        %1597 = vrot.lane.b32.xlu0 %v1208, 115
        %v1598 = vpop.permute.xlu0 %1597
        %vm1599 = vcmp.lt.s32.totalorder %v1214, 115
        %v1600 = vsel %vm1599, %v1596, %v1598
        %v1601 = vsel %vm1599, %v1598, %v1596
        %s1602 = scalar_lea.vmem [#allocation6], 448
        %v1603 = vld [vmem:[%s1602] sm:$0xff]
        %v1604 = vld [vmem:[%s1602 + $0x8] sm:$0xff]
        %v1605 = vmul.f32 %v1600, %v1603
        %v1606 = vmul.f32 %v1601, %v1604
        %v1607 = vadd.f32 %v1579, %v1605
        %v1608 = vadd.f32 %v1580, %v1606
        %1609 = vrot.lane.b32.xlu0 %v1207, 114
        %v1610 = vpop.permute.xlu0 %1609
        %1611 = vrot.lane.b32.xlu0 %v1208, 114
        %v1612 = vpop.permute.xlu0 %1611
        %vm1613 = vcmp.lt.s32.totalorder %v1214, 114
        %v1614 = vsel %vm1613, %v1610, %v1612
        %v1615 = vsel %vm1613, %v1612, %v1610
        %s1616 = scalar_lea.vmem [#allocation6], 464
        %v1617 = vld [vmem:[%s1616] sm:$0xff]
        %v1618 = vld [vmem:[%s1616 + $0x8] sm:$0xff]
        %v1619 = vmul.f32 %v1614, %v1617
        %v1620 = vmul.f32 %v1615, %v1618
        %v1621 = vadd.f32 %v1593, %v1619
        %v1622 = vadd.f32 %v1594, %v1620
        %1623 = vrot.lane.b32.xlu0 %v1207, 113
        %v1624 = vpop.permute.xlu0 %1623
        %1625 = vrot.lane.b32.xlu0 %v1208, 113
        %v1626 = vpop.permute.xlu0 %1625
        %vm1627 = vcmp.lt.s32.totalorder %v1214, 113
        %v1628 = vsel %vm1627, %v1624, %v1626
        %v1629 = vsel %vm1627, %v1626, %v1624
        %s1630 = scalar_lea.vmem [#allocation6], 480
        %v1631 = vld [vmem:[%s1630] sm:$0xff]
        %v1632 = vld [vmem:[%s1630 + $0x8] sm:$0xff]
        %v1633 = vmul.f32 %v1628, %v1631
        %v1634 = vmul.f32 %v1629, %v1632
        %v1635 = vadd.f32 %v1607, %v1633
        %v1636 = vadd.f32 %v1608, %v1634
        %1637 = vrot.lane.b32.xlu0 %v1207, 112
        %v1638 = vpop.permute.xlu0 %1637
        %1639 = vrot.lane.b32.xlu0 %v1208, 112
        %v1640 = vpop.permute.xlu0 %1639
        %vm1641 = vcmp.lt.s32.totalorder %v1214, 112
        %v1642 = vsel %vm1641, %v1638, %v1640
        %v1643 = vsel %vm1641, %v1640, %v1638
        %s1644 = scalar_lea.vmem [#allocation6], 496
        %v1645 = vld [vmem:[%s1644] sm:$0xff]
        %v1646 = vld [vmem:[%s1644 + $0x8] sm:$0xff]
        %v1647 = vmul.f32 %v1642, %v1645
        %v1648 = vmul.f32 %v1643, %v1646
        %v1649 = vadd.f32 %v1621, %v1647
        %v1650 = vadd.f32 %v1622, %v1648
        %1651 = vrot.lane.b32.xlu0 %v1207, 111
        %v1652 = vpop.permute.xlu0 %1651
        %1653 = vrot.lane.b32.xlu0 %v1208, 111
        %v1654 = vpop.permute.xlu0 %1653
        %vm1655 = vcmp.lt.s32.totalorder %v1214, 111
        %v1656 = vsel %vm1655, %v1652, %v1654
        %v1657 = vsel %vm1655, %v1654, %v1652
        %s1658 = scalar_lea.vmem [#allocation6], 512
        %v1659 = vld [vmem:[%s1658] sm:$0xff]
        %v1660 = vld [vmem:[%s1658 + $0x8] sm:$0xff]
        %v1661 = vmul.f32 %v1656, %v1659
        %v1662 = vmul.f32 %v1657, %v1660
        %v1663 = vadd.f32 %v1635, %v1661
        %v1664 = vadd.f32 %v1636, %v1662
        %1665 = vrot.lane.b32.xlu0 %v1207, 110
        %v1666 = vpop.permute.xlu0 %1665
        %1667 = vrot.lane.b32.xlu0 %v1208, 110
        %v1668 = vpop.permute.xlu0 %1667
        %vm1669 = vcmp.lt.s32.totalorder %v1214, 110
        %v1670 = vsel %vm1669, %v1666, %v1668
        %v1671 = vsel %vm1669, %v1668, %v1666
        %s1672 = scalar_lea.vmem [#allocation6], 528
        %v1673 = vld [vmem:[%s1672] sm:$0xff]
        %v1674 = vld [vmem:[%s1672 + $0x8] sm:$0xff]
        %v1675 = vmul.f32 %v1670, %v1673
        %v1676 = vmul.f32 %v1671, %v1674
        %v1677 = vadd.f32 %v1649, %v1675
        %v1678 = vadd.f32 %v1650, %v1676
        %1679 = vrot.lane.b32.xlu0 %v1207, 109
        %v1680 = vpop.permute.xlu0 %1679
        %1681 = vrot.lane.b32.xlu0 %v1208, 109
        %v1682 = vpop.permute.xlu0 %1681
        %vm1683 = vcmp.lt.s32.totalorder %v1214, 109
        %v1684 = vsel %vm1683, %v1680, %v1682
        %v1685 = vsel %vm1683, %v1682, %v1680
        %s1686 = scalar_lea.vmem [#allocation6], 544
        %v1687 = vld [vmem:[%s1686] sm:$0xff]
        %v1688 = vld [vmem:[%s1686 + $0x8] sm:$0xff]
        %v1689 = vmul.f32 %v1684, %v1687
        %v1690 = vmul.f32 %v1685, %v1688
        %v1691 = vadd.f32 %v1663, %v1689
        %v1692 = vadd.f32 %v1664, %v1690
        %1693 = vrot.lane.b32.xlu0 %v1207, 99
        %v1694 = vpop.permute.xlu0 %1693
        %1695 = vrot.lane.b32.xlu0 %v1208, 99
        %v1696 = vpop.permute.xlu0 %1695
        %vm1697 = vcmp.lt.s32.totalorder %v1214, 99
        %v1698 = vsel %vm1697, %v1694, %v1696
        %v1699 = vsel %vm1697, %v1696, %v1694
        %s1700 = scalar_lea.vmem [#allocation6], 560
        %v1701 = vld [vmem:[%s1700] sm:$0xff]
        %v1702 = vld [vmem:[%s1700 + $0x8] sm:$0xff]
        %v1703 = vmul.f32 %v1698, %v1701
        %v1704 = vmul.f32 %v1699, %v1702
        %v1705 = vadd.f32 %v1677, %v1703
        %v1706 = vadd.f32 %v1678, %v1704
        %1707 = vrot.lane.b32.xlu0 %v1207, 98
        %v1708 = vpop.permute.xlu0 %1707
        %1709 = vrot.lane.b32.xlu0 %v1208, 98
        %v1710 = vpop.permute.xlu0 %1709
        %vm1711 = vcmp.lt.s32.totalorder %v1214, 98
        %v1712 = vsel %vm1711, %v1708, %v1710
        %v1713 = vsel %vm1711, %v1710, %v1708
        %s1714 = scalar_lea.vmem [#allocation6], 576
        %v1715 = vld [vmem:[%s1714] sm:$0xff]
        %v1716 = vld [vmem:[%s1714 + $0x8] sm:$0xff]
        %v1717 = vmul.f32 %v1712, %v1715
        %v1718 = vmul.f32 %v1713, %v1716
        %v1719 = vadd.f32 %v1691, %v1717
        %v1720 = vadd.f32 %v1692, %v1718
        %1721 = vrot.lane.b32.xlu0 %v1207, 97
        %v1722 = vpop.permute.xlu0 %1721
        %1723 = vrot.lane.b32.xlu0 %v1208, 97
        %v1724 = vpop.permute.xlu0 %1723
        %vm1725 = vcmp.lt.s32.totalorder %v1214, 97
        %v1726 = vsel %vm1725, %v1722, %v1724
        %v1727 = vsel %vm1725, %v1724, %v1722
        %s1728 = scalar_lea.vmem [#allocation6], 592
        %v1729 = vld [vmem:[%s1728] sm:$0xff]
        %v1730 = vld [vmem:[%s1728 + $0x8] sm:$0xff]
        %v1731 = vmul.f32 %v1726, %v1729
        %v1732 = vmul.f32 %v1727, %v1730
        %v1733 = vadd.f32 %v1705, %v1731
        %v1734 = vadd.f32 %v1706, %v1732
        %1735 = vrot.lane.b32.xlu0 %v1207, 96
        %v1736 = vpop.permute.xlu0 %1735
        %1737 = vrot.lane.b32.xlu0 %v1208, 96
        %v1738 = vpop.permute.xlu0 %1737
        %vm1739 = vcmp.lt.s32.totalorder %v1214, 96
        %v1740 = vsel %vm1739, %v1736, %v1738
        %v1741 = vsel %vm1739, %v1738, %v1736
        %s1742 = scalar_lea.vmem [#allocation6], 608
        %v1743 = vld [vmem:[%s1742] sm:$0xff]
        %v1744 = vld [vmem:[%s1742 + $0x8] sm:$0xff]
        %v1745 = vmul.f32 %v1740, %v1743
        %v1746 = vmul.f32 %v1741, %v1744
        %v1747 = vadd.f32 %v1719, %v1745
        %v1748 = vadd.f32 %v1720, %v1746
        %1749 = vrot.lane.b32.xlu0 %v1207, 95
        %v1750 = vpop.permute.xlu0 %1749
        %1751 = vrot.lane.b32.xlu0 %v1208, 95
        %v1752 = vpop.permute.xlu0 %1751
        %vm1753 = vcmp.lt.s32.totalorder %v1214, 95
        %v1754 = vsel %vm1753, %v1750, %v1752
        %v1755 = vsel %vm1753, %v1752, %v1750
        %s1756 = scalar_lea.vmem [#allocation6], 624
        %v1757 = vld [vmem:[%s1756] sm:$0xff]
        %v1758 = vld [vmem:[%s1756 + $0x8] sm:$0xff]
        %v1759 = vmul.f32 %v1754, %v1757
        %v1760 = vmul.f32 %v1755, %v1758
        %v1761 = vadd.f32 %v1733, %v1759
        %v1762 = vadd.f32 %v1734, %v1760
        %1763 = vrot.lane.b32.xlu0 %v1207, 94
        %v1764 = vpop.permute.xlu0 %1763
        %1765 = vrot.lane.b32.xlu0 %v1208, 94
        %v1766 = vpop.permute.xlu0 %1765
        %vm1767 = vcmp.lt.s32.totalorder %v1214, 94
        %v1768 = vsel %vm1767, %v1764, %v1766
        %v1769 = vsel %vm1767, %v1766, %v1764
        %s1770 = scalar_lea.vmem [#allocation6], 640
        %v1771 = vld [vmem:[%s1770] sm:$0xff]
        %v1772 = vld [vmem:[%s1770 + $0x8] sm:$0xff]
        %v1773 = vmul.f32 %v1768, %v1771
        %v1774 = vmul.f32 %v1769, %v1772
        %v1775 = vadd.f32 %v1747, %v1773
        %v1776 = vadd.f32 %v1748, %v1774
        %1777 = vrot.lane.b32.xlu0 %v1207, 93
        %v1778 = vpop.permute.xlu0 %1777
        %1779 = vrot.lane.b32.xlu0 %v1208, 93
        %v1780 = vpop.permute.xlu0 %1779
        %vm1781 = vcmp.lt.s32.totalorder %v1214, 93
        %v1782 = vsel %vm1781, %v1778, %v1780
        %v1783 = vsel %vm1781, %v1780, %v1778
        %s1784 = scalar_lea.vmem [#allocation6], 656
        %v1785 = vld [vmem:[%s1784] sm:$0xff]
        %v1786 = vld [vmem:[%s1784 + $0x8] sm:$0xff]
        %v1787 = vmul.f32 %v1782, %v1785
        %v1788 = vmul.f32 %v1783, %v1786
        %v1789 = vadd.f32 %v1761, %v1787
        %v1790 = vadd.f32 %v1762, %v1788
        %1791 = vrot.lane.b32.xlu0 %v1207, 83
        %v1792 = vpop.permute.xlu0 %1791
        %1793 = vrot.lane.b32.xlu0 %v1208, 83
        %v1794 = vpop.permute.xlu0 %1793
        %vm1795 = vcmp.lt.s32.totalorder %v1214, 83
        %v1796 = vsel %vm1795, %v1792, %v1794
        %v1797 = vsel %vm1795, %v1794, %v1792
        %s1798 = scalar_lea.vmem [#allocation6], 672
        %v1799 = vld [vmem:[%s1798] sm:$0xff]
        %v1800 = vld [vmem:[%s1798 + $0x8] sm:$0xff]
        %v1801 = vmul.f32 %v1796, %v1799
        %v1802 = vmul.f32 %v1797, %v1800
        %v1803 = vadd.f32 %v1775, %v1801
        %v1804 = vadd.f32 %v1776, %v1802
        %1805 = vrot.lane.b32.xlu0 %v1207, 82
        %v1806 = vpop.permute.xlu0 %1805
        %1807 = vrot.lane.b32.xlu0 %v1208, 82
        %v1808 = vpop.permute.xlu0 %1807
        %vm1809 = vcmp.lt.s32.totalorder %v1214, 82
        %v1810 = vsel %vm1809, %v1806, %v1808
        %v1811 = vsel %vm1809, %v1808, %v1806
        %s1812 = scalar_lea.vmem [#allocation6], 688
        %v1813 = vld [vmem:[%s1812] sm:$0xff]
        %v1814 = vld [vmem:[%s1812 + $0x8] sm:$0xff]
        %v1815 = vmul.f32 %v1810, %v1813
        %v1816 = vmul.f32 %v1811, %v1814
        %v1817 = vadd.f32 %v1789, %v1815
        %v1818 = vadd.f32 %v1790, %v1816
        %1819 = vrot.lane.b32.xlu0 %v1207, 81
        %v1820 = vpop.permute.xlu0 %1819
        %1821 = vrot.lane.b32.xlu0 %v1208, 81
        %v1822 = vpop.permute.xlu0 %1821
        %vm1823 = vcmp.lt.s32.totalorder %v1214, 81
        %v1824 = vsel %vm1823, %v1820, %v1822
        %v1825 = vsel %vm1823, %v1822, %v1820
        %s1826 = scalar_lea.vmem [#allocation6], 704
        %v1827 = vld [vmem:[%s1826] sm:$0xff]
        %v1828 = vld [vmem:[%s1826 + $0x8] sm:$0xff]
        %v1829 = vmul.f32 %v1824, %v1827
        %v1830 = vmul.f32 %v1825, %v1828
        %v1831 = vadd.f32 %v1803, %v1829
        %v1832 = vadd.f32 %v1804, %v1830
        %1833 = vrot.lane.b32.xlu0 %v1207, 80
        %v1834 = vpop.permute.xlu0 %1833
        %1835 = vrot.lane.b32.xlu0 %v1208, 80
        %v1836 = vpop.permute.xlu0 %1835
        %vm1837 = vcmp.lt.s32.totalorder %v1214, 80
        %v1838 = vsel %vm1837, %v1834, %v1836
        %v1839 = vsel %vm1837, %v1836, %v1834
        %s1840 = scalar_lea.vmem [#allocation6], 720
        %v1841 = vld [vmem:[%s1840] sm:$0xff]
        %v1842 = vld [vmem:[%s1840 + $0x8] sm:$0xff]
        %v1843 = vmul.f32 %v1838, %v1841
        %v1844 = vmul.f32 %v1839, %v1842
        %v1845 = vadd.f32 %v1817, %v1843
        %v1846 = vadd.f32 %v1818, %v1844
        %1847 = vrot.lane.b32.xlu0 %v1207, 79
        %v1848 = vpop.permute.xlu0 %1847
        %1849 = vrot.lane.b32.xlu0 %v1208, 79
        %v1850 = vpop.permute.xlu0 %1849
        %vm1851 = vcmp.lt.s32.totalorder %v1214, 79
        %v1852 = vsel %vm1851, %v1848, %v1850
        %v1853 = vsel %vm1851, %v1850, %v1848
        %s1854 = scalar_lea.vmem [#allocation6], 736
        %v1855 = vld [vmem:[%s1854] sm:$0xff]
        %v1856 = vld [vmem:[%s1854 + $0x8] sm:$0xff]
        %v1857 = vmul.f32 %v1852, %v1855
        %v1858 = vmul.f32 %v1853, %v1856
        %v1859 = vadd.f32 %v1831, %v1857
        %v1860 = vadd.f32 %v1832, %v1858
        %1861 = vrot.lane.b32.xlu0 %v1207, 78
        %v1862 = vpop.permute.xlu0 %1861
        %1863 = vrot.lane.b32.xlu0 %v1208, 78
        %v1864 = vpop.permute.xlu0 %1863
        %vm1865 = vcmp.lt.s32.totalorder %v1214, 78
        %v1866 = vsel %vm1865, %v1862, %v1864
        %v1867 = vsel %vm1865, %v1864, %v1862
        %s1868 = scalar_lea.vmem [#allocation6], 752
        %v1869 = vld [vmem:[%s1868] sm:$0xff]
        %v1870 = vld [vmem:[%s1868 + $0x8] sm:$0xff]
        %v1871 = vmul.f32 %v1866, %v1869
        %v1872 = vmul.f32 %v1867, %v1870
        %v1873 = vadd.f32 %v1845, %v1871
        %v1874 = vadd.f32 %v1846, %v1872
        %1875 = vrot.lane.b32.xlu0 %v1207, 77
        %v1876 = vpop.permute.xlu0 %1875
        %1877 = vrot.lane.b32.xlu0 %v1208, 77
        %v1878 = vpop.permute.xlu0 %1877
        %vm1879 = vcmp.lt.s32.totalorder %v1214, 77
        %v1880 = vsel %vm1879, %v1876, %v1878
        %v1881 = vsel %vm1879, %v1878, %v1876
        %s1882 = scalar_lea.vmem [#allocation6], 768
        %v1883 = vld [vmem:[%s1882] sm:$0xff]
        %v1884 = vld [vmem:[%s1882 + $0x8] sm:$0xff]
        %v1885 = vmul.f32 %v1880, %v1883
        %v1886 = vmul.f32 %v1881, %v1884
        %v1887 = vadd.f32 %v1859, %v1885
        %v1888 = vadd.f32 %v1860, %v1886
        %v1889 = vadd.f32 %v1887, %v1873
        %v1890 = vadd.f32 %v1888, %v1874
        %v1893 = vrot.slane %v1889, 4
        %v1894 = vrot.slane %v1890, 4
        %v1897 = vadd.f32 %v1889, %v1893
        %v1898 = vadd.f32 %v1890, %v1894
        %s1899 = sld [smem:[#allocation2]]
        %v1900 = vstv %s1899
        %v1901 = vadd.f32 %v1897, %v1900
        %v1902 = vadd.f32 %v1898, %v1900
        %v1903 = vxor.u32 %v1901, 2147483648
        %v1904 = vxor.u32 %v1902, 2147483648
        %v1905 = vmul.f32 %v1903, 1.442695
        %v1906 = vpow.pop %v1905
        %v1907 = vmul.f32 %v1904, 1.442695
        %v1908 = vpow.pop %v1907
        %v1909 = vadd.f32 %v1906, 1.0
        %v1910 = vadd.f32 %v1908, 1.0
        %v1911 = vrcp.pop %v1909
        %v1912 = vmul.f32 %v1909, %v1911
        %v1913 = vsub.f32 1.0, %v1912
        %v1914 = vmul.f32 %v1911, %v1913
        %v1915 = vadd.f32 %v1911, %v1914
        %vm1916 = vweird.f32 %v1909
        %vm1917 = vweird.f32 %v1911
        %vm1918 = vmor %vm1916, %vm1917
        %v1919 = vsel %vm1918, %v1911, %v1915
        %v1920 = vand.u32 2147483647, %v1909
        %vm1921 = vcmp.eq.f32.partialorder %v1920, 8.507059e+37
        %v1922 = vand.u32 %v1909, 2147483648
        %v1923 = vor.u32 1.1754944e-38, %v1922
        %v1924 = vsel %vm1921, %v1923, %v1919
        %v1925 = vmul.f32 1.0, %v1924
        %v1926 = vrcp.pop %v1910
        %v1927 = vmul.f32 %v1910, %v1926
        %v1928 = vsub.f32 1.0, %v1927
        %v1929 = vmul.f32 %v1926, %v1928
        %v1930 = vadd.f32 %v1926, %v1929
        %vm1931 = vweird.f32 %v1910
        %vm1932 = vweird.f32 %v1926
        %vm1933 = vmor %vm1931, %vm1932
        %v1934 = vsel %vm1933, %v1926, %v1930
        %v1935 = vand.u32 2147483647, %v1910
        %vm1936 = vcmp.eq.f32.partialorder %v1935, 8.507059e+37
        %v1937 = vand.u32 %v1910, 2147483648
        %v1938 = vor.u32 1.1754944e-38, %v1937
        %v1939 = vsel %vm1936, %v1938, %v1934
        %v1940 = vmul.f32 1.0, %v1939
        %v1941 = vperm.slane %v1925, 0
        %v1942 = vperm.slane %v1940, 0
        %v1943 = vmul.f32 %v850, %v1941
        %v1944 = vmul.f32 %v851, %v1942
        %v1945 = vmul.f32 %v852, %v1941
        %v1946 = vmul.f32 %v853, %v1942
        %v1947 = vmul.f32 %v854, %v1941
        %v1948 = vmul.f32 %v855, %v1942
        %v1949 = vmul.f32 %v856, %v1941
        %v1950 = vmul.f32 %v857, %v1942
        %1951 = vst [vmem:[%s317] sm:$0xff] %v1943
        %1952 = vst [vmem:[%s317 + $0x8] sm:$0xff] %v1944
        %1953 = vst [vmem:[%s317 + $0x10] sm:$0xff] %v1945
        %1954 = vst [vmem:[%s317 + $0x18] sm:$0xff] %v1946
        %1955 = vst [vmem:[%s317 + $0x20] sm:$0xff] %v1947
        %1956 = vst [vmem:[%s317 + $0x28] sm:$0xff] %v1948
        %1957 = vst [vmem:[%s317 + $0x30] sm:$0xff] %v1949
        %1958 = vst [vmem:[%s317 + $0x38] sm:$0xff] %v1950
        %v1959 = vperm.slane %v1925, 1
        %v1960 = vperm.slane %v1940, 1
        %v1961 = vmul.f32 %v935, %v1959
        %v1962 = vmul.f32 %v936, %v1960
        %v1963 = vmul.f32 %v937, %v1959
        %v1964 = vmul.f32 %v938, %v1960
        %v1965 = vmul.f32 %v939, %v1959
        %v1966 = vmul.f32 %v940, %v1960
        %v1967 = vmul.f32 %v941, %v1959
        %v1968 = vmul.f32 %v942, %v1960
        %1969 = vst [vmem:[%s317 + $0x40] sm:$0xff] %v1961
        %1970 = vst [vmem:[%s317 + $0x48] sm:$0xff] %v1962
        %1971 = vst [vmem:[%s317 + $0x50] sm:$0xff] %v1963
        %1972 = vst [vmem:[%s317 + $0x58] sm:$0xff] %v1964
        %1973 = vst [vmem:[%s317 + $0x60] sm:$0xff] %v1965
        %1974 = vst [vmem:[%s317 + $0x68] sm:$0xff] %v1966
        %1975 = vst [vmem:[%s317 + $0x70] sm:$0xff] %v1967
        %1976 = vst [vmem:[%s317 + $0x78] sm:$0xff] %v1968
        %v1977 = vperm.slane %v1925, 2
        %v1978 = vperm.slane %v1940, 2
        %v1979 = vmul.f32 %v1017, %v1977
        %v1980 = vmul.f32 %v1018, %v1978
        %v1981 = vmul.f32 %v1019, %v1977
        %v1982 = vmul.f32 %v1020, %v1978
        %v1983 = vmul.f32 %v1021, %v1977
        %v1984 = vmul.f32 %v1022, %v1978
        %v1985 = vmul.f32 %v1023, %v1977
        %v1986 = vmul.f32 %v1024, %v1978
        %1987 = vst [vmem:[%s317 + $0x80] sm:$0xff] %v1979
        %1988 = vst [vmem:[%s317 + $0x88] sm:$0xff] %v1980
        %1989 = vst [vmem:[%s317 + $0x90] sm:$0xff] %v1981
        %1990 = vst [vmem:[%s317 + $0x98] sm:$0xff] %v1982
        %1991 = vst [vmem:[%s317 + $0xa0] sm:$0xff] %v1983
        %1992 = vst [vmem:[%s317 + $0xa8] sm:$0xff] %v1984
        %1993 = vst [vmem:[%s317 + $0xb0] sm:$0xff] %v1985
        %1994 = vst [vmem:[%s317 + $0xb8] sm:$0xff] %v1986
        %v1995 = vperm.slane %v1925, 3
        %v1996 = vperm.slane %v1940, 3
        %v1997 = vmul.f32 %v1099, %v1995
        %v1998 = vmul.f32 %v1100, %v1996
        %v1999 = vmul.f32 %v1101, %v1995
        %v2000 = vmul.f32 %v1102, %v1996
        %v2001 = vmul.f32 %v1103, %v1995
        %v2002 = vmul.f32 %v1104, %v1996
        %v2003 = vmul.f32 %v1105, %v1995
        %v2004 = vmul.f32 %v1106, %v1996
        %2005 = vst [vmem:[%s317 + $0xc0] sm:$0xff] %v1997
        %2006 = vst [vmem:[%s317 + $0xc8] sm:$0xff] %v1998
        %2007 = vst [vmem:[%s317 + $0xd0] sm:$0xff] %v1999
        %2008 = vst [vmem:[%s317 + $0xd8] sm:$0xff] %v2000
        %2009 = vst [vmem:[%s317 + $0xe0] sm:$0xff] %v2001
        %2010 = vst [vmem:[%s317 + $0xe8] sm:$0xff] %v2002
        %2011 = vst [vmem:[%s317 + $0xf0] sm:$0xff] %v2003
        %2012 = vst [vmem:[%s317 + $0xf8] sm:$0xff] %v2004
        %s2013 = sand.u32 %s186, 1
        %s2014 = scalar_lea.sflag [#allocation5], %s2013
        %s2015 = sand.u32 %s186, 1
        %s2016 = smul.addr %s2015, 256
        %s2017 = scalar_lea.vmem [#allocation8], %s2016
        // Predicated region
        $region57: #{tpu_custom_call.1} parent=47 // pred_check
          %p2018 = pneg %p196
        $region58: #{tpu_custom_call.1} parent=47 // pred_check_branch
          %2020 = sbr.rel (%p2018) target = $region60
        $region59: #{tpu_custom_call.1} parent=47 // pred_region
          %s2021 = smul.u32 16, %s26
          %2023 = vsyncadd %s2014, 0
          %s2024 = smul.addr %s2021, 2
          %s2025 = smul.addr %s2024, 8
          %s2026 = scalar_lea.hbm %s7, %s2025
          %s2027 = sshll.u32 %s2017, 4
          %s2028 = int_to_ptr.vmem [resolvable:$true] %s2027
          %s2029 = sshll.u32 %s2026, 4
          %s2030 = int_to_ptr.hbm [resolvable:$true] %s2029
          %2035 = dma.vmem_to_hbm [thread:$0]  %s2028, 4096, %s2030, %s2014, 256, 256, 16
        $region60: #{tpu_custom_call.1} parent=47 // pred_fallthru
          _
      $region48: #{tpu_custom_call.1} parent=5 // pred_fallthru
        _
      %p2036 = scmp.le.s32.totalorder 2, %s21
      // Predicated region
      $region61: #{tpu_custom_call.1} parent=5 // pred_check
        %p2037 = pneg %p2036
      $region62: #{tpu_custom_call.1} parent=5 // pred_check_branch
        %2039 = sbr.rel (%p2037) target = $region64
      $region63: #{tpu_custom_call.1} parent=5 // pred_region
        %s2040 = ssub.s32 %s21, 2
        // Predicated region
        $region65: #{tpu_custom_call.1} parent=63 // pred_check
          %p2041 = pneg %p202
        $region66: #{tpu_custom_call.1} parent=63 // pred_check_branch
          %2043 = sbr.rel (%p2041) target = $region68
        $region67: #{tpu_custom_call.1} parent=63 // pred_region
          %s2044 = sand.u32 %s187, 1
          %s2045 = scalar_lea.sflag [#allocation5], %s2044
          %s2046 = sand.u32 %s187, 1
          %s2047 = smul.addr %s2046, 256
          %s2048 = scalar_lea.vmem [#allocation8], %s2047
          %2050 = dma.done %s2045, 4096
        $region68: #{tpu_custom_call.1} parent=63 // pred_fallthru
          _
      $region64: #{tpu_custom_call.1} parent=5 // pred_fallthru
        _
    $region6: #{tpu_custom_call.1} parent=1 // loop_footer
      %s25 = sadd.s32 1, %s21
    $region7: #{tpu_custom_call.1} parent=1 // loop_footer_branch
      %20 = sbr.rel target = $region3
    $region8: #{tpu_custom_call.1} parent=1 // loop_exit
      _
    %2051 = vsyncpa [#allocation4], 1
    %s2052 = scalar_lea.sflag [#allocation4], 1
    %2053 = vsyncpa %s2052, 1
    %2054 = vsyncpa [#allocation7], 1
    %2055 = vsyncpa [#allocation5], 1
    %s2056 = scalar_lea.sflag [#allocation5], 1
    %2057 = vsyncpa %s2056, 1

</llo_original>
